<compile_context>
chip_gen: v7x
topology: tpu7x:2x2x1
jax: 0.10.0
libtpu: 0.0.40
codegen_flags: <defaults>
</compile_context>

<pallas_src>
import functools

import jax
import jax.numpy as jnp
from jax import lax
from jax.experimental import pallas as pl
from jax.experimental.pallas import tpu as pltpu


def xl_attention_kernel(x_ref, p_ref, wq_ref, wk_ref, wv_ref, wpos_ref, wo_t_ref,
                        bk_ref, br_ref, mask_ref, o_ref, acc_ref, *,
                        qlen, klen, n_head, d_head, scale):
    f32, bf16 = jnp.float32, jnp.bfloat16

    def mm(a, b):      # (m,k) @ (k,n)   bf16 operands, f32 accumulate (native MXU)
        return lax.dot_general(a, b, (((1,), (0,)), ((), ())),
                               preferred_element_type=f32)

    def mm_nt(a, b):   # (m,k) @ (n,k)^T (contract last dims, no transpose op)
        return lax.dot_general(a, b, (((1,), (1,)), ((), ())),
                               preferred_element_type=f32)

    x = x_ref[0]                              # (klen, d_model) bf16
    pos = p_ref[...]                          # (klen, d_model) bf16
    # mlen = klen - qlen is kept a multiple of 8 by the caller so this row
    # slice stays sublane-aligned.
    xq = x_ref[0, klen - qlen:, :]            # (qlen, d_model) bf16

    # Projections (f32 accumulators; k/v/r rounded once to bf16 for later MXU use).
    q = mm(xq, wq_ref[...])                   # (qlen, H*Dh) f32
    k16 = mm(x, wk_ref[...]).astype(bf16)     # (klen, H*Dh)
    v16 = mm(x, wv_ref[...]).astype(bf16)     # (klen, H*Dh)
    r16 = mm(pos, wpos_ref[...]).astype(bf16)  # (klen, H*Dh)

    # Hoist the relative biases out of the head loop and fold the softmax scale
    # into Q (the rel-shift is linear, so scaling commutes with it).
    q_bk = ((q + bk_ref[...]) * scale).astype(bf16)   # (qlen, H*Dh)
    q_br = ((q + br_ref[...]) * scale).astype(bf16)

    mask_add = mask_ref[...]                  # (qlen, klen) f32 additive mask
    wo16 = wo_t_ref[...]                      # (H*Dh, d_model) bf16

    # ---- exact vectorized Transformer-XL rel-shift -------------------------
    # torch's zero-pad/view trick maps, for a (qlen, klen) block:
    #   out[i, j] = BD[i, j + qlen-1-i]          for j <= mlen + i
    #   out[i, j] = 0                            for j == mlen + i + 1
    #   out[i, j] = BD[i+1, j - mlen - i - 2]    for j >  mlen + i + 1
    # Implemented as two per-row barrel rotations + selects (all hoisted
    # row/col/select masks are computed once, outside the head loop).
    nbits = (qlen - 1).bit_length()
    row = lax.broadcasted_iota(jnp.int32, (qlen, 1), 0)
    col = lax.broadcasted_iota(jnp.int32, (qlen, klen), 1)
    boundary = (klen - qlen) + row                                   # mlen + i
    sel1 = [((qlen - 1 - row) & (1 << b)) != 0 for b in range(nbits)]
    sel3 = [(jnp.maximum(qlen - 2 - row, 0) & (1 << b)) != 0 for b in range(nbits)]
    in_r1 = col <= boundary
    at_zero = col == boundary + 1
    zero_blk = jnp.zeros((qlen, klen), f32)

    def barrel(xm, sels):          # left-rotate row i by its per-row amount
        out = xm
        for b, sel in enumerate(sels):
            amt = 1 << b
            rolled = jnp.concatenate([out[:, amt:], out[:, :amt]], axis=1)
            out = jnp.where(sel, rolled, out)
        return out

    def rel_shift(bd):             # exact equivalent of torch _rel_shift
        p1 = barrel(bd, sel1)                                          # same-row part
        bd_up = jnp.concatenate([bd[1:, :], zero_blk[:1, :]], axis=0)  # wrap rows
        p3 = barrel(bd_up, sel3)
        return jnp.where(in_r1, p1, jnp.where(at_zero, zero_blk, p3))

    # ---- per-head attention; output projection accumulated into f32 scratch ----
    for h in range(n_head):        # static head loop (small n_head)
        sl = slice(h * d_head, (h + 1) * d_head)
        AC = mm_nt(q_bk[:, sl], k16[:, sl])              # (qlen, klen) f32
        BD = mm_nt(q_br[:, sl], r16[:, sl])              # (qlen, klen) f32
        scores = AC + rel_shift(BD) + mask_add

        m = jnp.max(scores, axis=1, keepdims=True)
        e = jnp.exp(scores - m)
        inv = pl.reciprocal(jnp.sum(e, axis=1, keepdims=True), approx=True)
        attn = (e * inv).astype(bf16)

        ctx = mm(attn, v16[:, sl]).astype(bf16)          # (qlen, d_head)
        contrib = mm(ctx, wo16[sl, :])                   # (qlen, d_model) f32
        if h == 0:
            acc_ref[...] = contrib
        else:
            acc_ref[...] += contrib

    o_ref[0] = acc_ref[...].astype(o_ref.dtype)


def xl_attention(x, p, w_query, w_key, w_value, w_out, w_position,
                 bias_k, bias_r, mask_add, qlen):
    B, klen, d_model = x.shape
    n_head, d_head = bias_k.shape
    hd = n_head * d_head
    assert klen >= qlen, "XlAttention requires klen >= qlen (non-negative memory)"
    scale = 1.0 / (d_head ** 0.5)
    bf16 = jnp.bfloat16

    # bf16 MXU operands (also halves weight/activation HBM traffic);
    # biases, mask, softmax and all accumulators stay f32.
    x16 = x.astype(bf16)
    p16 = p.astype(bf16)
    wq = w_query.reshape(d_model, hd).astype(bf16)
    wk = w_key.reshape(d_model, hd).astype(bf16)
    wv = w_value.reshape(d_model, hd).astype(bf16)
    wpos = w_position.reshape(d_model, hd).astype(bf16)
    wo_t = w_out.reshape(d_model, hd).T.astype(bf16)      # (hd, d_model)
    bk = bias_k.reshape(1, hd).astype(jnp.float32)
    br = bias_r.reshape(1, hd).astype(jnp.float32)
    mask_add = mask_add.astype(jnp.float32)

    kernel = functools.partial(xl_attention_kernel, qlen=qlen, klen=klen,
                               n_head=n_head, d_head=d_head, scale=scale)
    const = lambda b: (0, 0)

    return pl.pallas_call(
        kernel,
        out_shape=jax.ShapeDtypeStruct((B, qlen, d_model), jnp.float32),
        grid_spec=pltpu.PrefetchScalarGridSpec(
            num_scalar_prefetch=0,
            grid=(B,),
            in_specs=[
                pl.BlockSpec((1, klen, d_model), lambda b: (b, 0, 0)),  # x (bf16)
                pl.BlockSpec((klen, d_model), const),                   # p (bf16)
                pl.BlockSpec((d_model, hd), const),                     # W_query
                pl.BlockSpec((d_model, hd), const),                     # W_key
                pl.BlockSpec((d_model, hd), const),                     # W_value
                pl.BlockSpec((d_model, hd), const),                     # W_position
                pl.BlockSpec((hd, d_model), const),                     # W_out^T
                pl.BlockSpec((1, hd), const),                           # bias_k (f32)
                pl.BlockSpec((1, hd), const),                           # bias_r (f32)
                pl.BlockSpec((qlen, klen), const),                      # additive mask
            ],
            out_specs=pl.BlockSpec((1, qlen, d_model), lambda b: (b, 0, 0)),
            scratch_shapes=[pltpu.VMEM((qlen, d_model), jnp.float32)],  # out-proj acc
        ),
        compiler_params=pltpu.CompilerParams(
            dimension_semantics=("parallel",),
            vmem_limit_bytes=32 * 1024 * 1024,
        ),
    )(x16, p16, wq, wk, wv, wpos, wo_t, bk, br, mask_add)


def reference(x, p, Wq, Wk, Wv, Wo, Wpos, bias_k, bias_r, mask_add, qlen, scale):
    """Pure-JAX (f32) re-implementation of XlAttention.forward (eval mode)."""
    embed = lambda W, t: jnp.einsum('dha,...ld->...lha', W, t, precision='highest')
    q = embed(Wq, x[:, -qlen:])
    k = embed(Wk, x)
    v = embed(Wv, x)
    r = embed(Wpos, p)
    AC = jnp.einsum('bind,bjnd->bijn', q + bias_k, k, precision='highest')
    BD = jnp.einsum('bind,jnd->bijn', q + bias_r, r, precision='highest')

    def rel_shift(t):
        B_, I, J, N = t.shape
        zp = jnp.zeros((B_, I, 1, N), t.dtype)
        tp = jnp.concatenate([zp, t], axis=2).reshape(B_, J + 1, I, N)
        return tp[:, 1:].reshape(B_, I, J, N)

    scores = scale * (AC + rel_shift(BD)) + mask_add[None, :, :, None]
    attn = jax.nn.softmax(scores, axis=2)
    ctx = jnp.einsum('blmh,bmha->blha', attn, v, precision='highest')
    return jnp.einsum('dha,blha->bld', Wo, ctx, precision='highest')


if __name__ == "__main__":
    B, qlen, mlen = 2, 8, 8              # mlen multiple of 8 -> aligned query slice
    klen = qlen + mlen
    d_model, n_head, d_head = 32, 4, 8
    scale = 1.0 / (d_head ** 0.5)

    key = jax.random.PRNGKey(0)
    ks = jax.random.split(key, 10)
    x = jax.random.normal(ks[0], (B, klen, d_model), jnp.float32)
    p = jax.random.normal(ks[1], (klen, d_model), jnp.float32)
    w_query = 0.1 * jax.random.normal(ks[2], (d_model, n_head, d_head), jnp.float32)
    w_key = 0.1 * jax.random.normal(ks[3], (d_model, n_head, d_head), jnp.float32)
    w_value = 0.1 * jax.random.normal(ks[4], (d_model, n_head, d_head), jnp.float32)
    w_out = 0.1 * jax.random.normal(ks[5], (d_model, n_head, d_head), jnp.float32)
    w_position = 0.1 * jax.random.normal(ks[6], (d_model, n_head, d_head), jnp.float32)
    bias_k = 0.1 * jax.random.normal(ks[7], (n_head, d_head), jnp.float32)
    bias_r = 0.1 * jax.random.normal(ks[8], (n_head, d_head), jnp.float32)

    # causal-with-memory additive mask: query i may attend keys j <= i + mlen
    ii = jnp.arange(qlen)[:, None]
    jj = jnp.arange(klen)[None, :]
    mask_add = jnp.where(jj <= ii + mlen, 0.0, -1e30).astype(jnp.float32)

    out = xl_attention(x, p, w_query, w_key, w_value, w_out, w_position,
                       bias_k, bias_r, mask_add, qlen)
    out = jax.block_until_ready(out)

    ref = reference(x, p, w_query, w_key, w_value, w_out, w_position,
                    bias_k, bias_r, mask_add, qlen, scale)
    assert out.shape == (B, qlen, d_model)
    # bf16 MXU operands vs. f32 reference -> relaxed tolerance.
    assert jnp.allclose(out, ref, rtol=3e-2, atol=3e-2), "kernel mismatch vs reference"
    print("KERNEL_OK")
</pallas_src>

<mosaic_0001>
module attributes {stable_mosaic.version = 11 : i64} {
  func.func @xl_attention_kernel(%arg0: i32, %arg1: memref<1x16x32xbf16, #tpu.memory_space<vmem>>, %arg2: memref<16x32xbf16, #tpu.memory_space<vmem>>, %arg3: memref<32x32xbf16, #tpu.memory_space<vmem>>, %arg4: memref<32x32xbf16, #tpu.memory_space<vmem>>, %arg5: memref<32x32xbf16, #tpu.memory_space<vmem>>, %arg6: memref<32x32xbf16, #tpu.memory_space<vmem>>, %arg7: memref<32x32xbf16, #tpu.memory_space<vmem>>, %arg8: memref<1x32xf32, #tpu.memory_space<vmem>>, %arg9: memref<1x32xf32, #tpu.memory_space<vmem>>, %arg10: memref<8x16xf32, #tpu.memory_space<vmem>>, %arg11: memref<1x8x32xf32, #tpu.memory_space<vmem>>, %arg12: memref<8x32xf32, #tpu.memory_space<vmem>>) attributes {dimension_semantics = [#tpu.dimension_semantics<parallel>], iteration_bounds = array<i64: 2>, scalar_prefetch = 0 : i64, scratch_operands = 1 : i64, tpu.core_type = #tpu.core_type<tc>, window_params = [{transform_indices = @transform_0, window_bounds = array<i64: 1, 16, 32>}, {pipeline_mode = #tpu.pipeline_mode<synchronous>, transform_indices = @transform_1, window_bounds = array<i64: 16, 32>}, {pipeline_mode = #tpu.pipeline_mode<synchronous>, transform_indices = @transform_2, window_bounds = array<i64: 32, 32>}, {pipeline_mode = #tpu.pipeline_mode<synchronous>, transform_indices = @transform_3, window_bounds = array<i64: 32, 32>}, {pipeline_mode = #tpu.pipeline_mode<synchronous>, transform_indices = @transform_4, window_bounds = array<i64: 32, 32>}, {pipeline_mode = #tpu.pipeline_mode<synchronous>, transform_indices = @transform_5, window_bounds = array<i64: 32, 32>}, {pipeline_mode = #tpu.pipeline_mode<synchronous>, transform_indices = @transform_6, window_bounds = array<i64: 32, 32>}, {pipeline_mode = #tpu.pipeline_mode<synchronous>, transform_indices = @transform_7, window_bounds = array<i64: 1, 32>}, {pipeline_mode = #tpu.pipeline_mode<synchronous>, transform_indices = @transform_8, window_bounds = array<i64: 1, 32>}, {pipeline_mode = #tpu.pipeline_mode<synchronous>, transform_indices = @transform_9, window_bounds = array<i64: 8, 16>}, {transform_indices = @transform_10, window_bounds = array<i64: 1, 8, 32>}]} {
    %c0 = arith.constant 0 : index
    %c0_0 = arith.constant 0 : index
    %c0_1 = arith.constant 0 : index
    %0 = vector.load %arg1[%c0, %c0_0, %c0_1] : memref<1x16x32xbf16, #tpu.memory_space<vmem>>, vector<1x16x32xbf16>
    %1 = vector.shape_cast %0 : vector<1x16x32xbf16> to vector<16x32xbf16>
    %c0_2 = arith.constant 0 : index
    %c0_3 = arith.constant 0 : index
    %2 = vector.load %arg2[%c0_2, %c0_3] : memref<16x32xbf16, #tpu.memory_space<vmem>>, vector<16x32xbf16>
    %c0_4 = arith.constant 0 : index
    %c8 = arith.constant 8 : index
    %c0_5 = arith.constant 0 : index
    %3 = vector.load %arg1[%c0_4, %c8, %c0_5] : memref<1x16x32xbf16, #tpu.memory_space<vmem>>, vector<1x8x32xbf16>
    %4 = vector.shape_cast %3 : vector<1x8x32xbf16> to vector<8x32xbf16>
    %c0_6 = arith.constant 0 : index
    %c0_7 = arith.constant 0 : index
    %5 = vector.load %arg3[%c0_6, %c0_7] : memref<32x32xbf16, #tpu.memory_space<vmem>>, vector<32x32xbf16>
    %cst = arith.constant dense<0.000000e+00> : vector<8x32xf32>
    %6 = tpu.matmul %4, %5, %cst {dimension_numbers = #tpu.dot_dimension_numbers<[1], [0], [0], [1], [0, 0, 1, 1], [], []>} : vector<8x32xbf16>, vector<32x32xbf16>, vector<8x32xf32> -> vector<8x32xf32>
    %c0_8 = arith.constant 0 : index
    %c0_9 = arith.constant 0 : index
    %7 = vector.load %arg4[%c0_8, %c0_9] : memref<32x32xbf16, #tpu.memory_space<vmem>>, vector<32x32xbf16>
    %cst_10 = arith.constant dense<0.000000e+00> : vector<16x32xf32>
    %8 = tpu.matmul %1, %7, %cst_10 {dimension_numbers = #tpu.dot_dimension_numbers<[1], [0], [0], [1], [0, 0, 1, 1], [], []>} : vector<16x32xbf16>, vector<32x32xbf16>, vector<16x32xf32> -> vector<16x32xf32>
    %9 = arith.truncf %8 : vector<16x32xf32> to vector<16x32xbf16>
    %c0_11 = arith.constant 0 : index
    %c0_12 = arith.constant 0 : index
    %10 = vector.load %arg5[%c0_11, %c0_12] : memref<32x32xbf16, #tpu.memory_space<vmem>>, vector<32x32xbf16>
    %cst_13 = arith.constant dense<0.000000e+00> : vector<16x32xf32>
    %11 = tpu.matmul %1, %10, %cst_13 {dimension_numbers = #tpu.dot_dimension_numbers<[1], [0], [0], [1], [0, 0, 1, 1], [], []>} : vector<16x32xbf16>, vector<32x32xbf16>, vector<16x32xf32> -> vector<16x32xf32>
    %12 = arith.truncf %11 : vector<16x32xf32> to vector<16x32xbf16>
    %c0_14 = arith.constant 0 : index
    %c0_15 = arith.constant 0 : index
    %13 = vector.load %arg6[%c0_14, %c0_15] : memref<32x32xbf16, #tpu.memory_space<vmem>>, vector<32x32xbf16>
    %cst_16 = arith.constant dense<0.000000e+00> : vector<16x32xf32>
    %14 = tpu.matmul %2, %13, %cst_16 {dimension_numbers = #tpu.dot_dimension_numbers<[1], [0], [0], [1], [0, 0, 1, 1], [], []>} : vector<16x32xbf16>, vector<32x32xbf16>, vector<16x32xf32> -> vector<16x32xf32>
    %15 = arith.truncf %14 : vector<16x32xf32> to vector<16x32xbf16>
    %c0_17 = arith.constant 0 : index
    %c0_18 = arith.constant 0 : index
    %16 = vector.load %arg8[%c0_17, %c0_18] : memref<1x32xf32, #tpu.memory_space<vmem>>, vector<1x32xf32>
    %17 = vector.broadcast %16 : vector<1x32xf32> to vector<8x32xf32>
    %18 = arith.addf %6, %17 : vector<8x32xf32>
    %cst_19 = arith.constant 0.353553385 : f32
    %19 = vector.broadcast %cst_19 : f32 to vector<8x32xf32>
    %20 = arith.mulf %18, %19 : vector<8x32xf32>
    %21 = arith.truncf %20 : vector<8x32xf32> to vector<8x32xbf16>
    %c0_20 = arith.constant 0 : index
    %c0_21 = arith.constant 0 : index
    %22 = vector.load %arg9[%c0_20, %c0_21] : memref<1x32xf32, #tpu.memory_space<vmem>>, vector<1x32xf32>
    %23 = vector.broadcast %22 : vector<1x32xf32> to vector<8x32xf32>
    %24 = arith.addf %6, %23 : vector<8x32xf32>
    %cst_22 = arith.constant 0.353553385 : f32
    %25 = vector.broadcast %cst_22 : f32 to vector<8x32xf32>
    %26 = arith.mulf %24, %25 : vector<8x32xf32>
    %27 = arith.truncf %26 : vector<8x32xf32> to vector<8x32xbf16>
    %c0_23 = arith.constant 0 : index
    %c0_24 = arith.constant 0 : index
    %28 = vector.load %arg10[%c0_23, %c0_24] : memref<8x16xf32, #tpu.memory_space<vmem>>, vector<8x16xf32>
    %c0_25 = arith.constant 0 : index
    %c0_26 = arith.constant 0 : index
    %29 = vector.load %arg7[%c0_25, %c0_26] : memref<32x32xbf16, #tpu.memory_space<vmem>>, vector<32x32xbf16>
    %30 = tpu.iota {dimensions = array<i32: 0>} : vector<8x1xi32>
    %31 = tpu.iota {dimensions = array<i32: 1>} : vector<8x16xi32>
    %c8_i32 = arith.constant 8 : i32
    %32 = vector.broadcast %c8_i32 : i32 to vector<8x1xi32>
    %33 = arith.addi %32, %30 : vector<8x1xi32>
    %c7_i32 = arith.constant 7 : i32
    %34 = vector.broadcast %c7_i32 : i32 to vector<8x1xi32>
    %35 = arith.subi %34, %30 : vector<8x1xi32>
    %c1_i32 = arith.constant 1 : i32
    %36 = vector.broadcast %c1_i32 : i32 to vector<8x1xi32>
    %37 = arith.andi %35, %36 : vector<8x1xi32>
    %c0_i32 = arith.constant 0 : i32
    %38 = vector.broadcast %c0_i32 : i32 to vector<8x1xi32>
    %39 = arith.cmpi ne, %37, %38 : vector<8x1xi32>
    %c7_i32_27 = arith.constant 7 : i32
    %40 = vector.broadcast %c7_i32_27 : i32 to vector<8x1xi32>
    %41 = arith.subi %40, %30 : vector<8x1xi32>
    %c2_i32 = arith.constant 2 : i32
    %42 = vector.broadcast %c2_i32 : i32 to vector<8x1xi32>
    %43 = arith.andi %41, %42 : vector<8x1xi32>
    %c0_i32_28 = arith.constant 0 : i32
    %44 = vector.broadcast %c0_i32_28 : i32 to vector<8x1xi32>
    %45 = arith.cmpi ne, %43, %44 : vector<8x1xi32>
    %c7_i32_29 = arith.constant 7 : i32
    %46 = vector.broadcast %c7_i32_29 : i32 to vector<8x1xi32>
    %47 = arith.subi %46, %30 : vector<8x1xi32>
    %c4_i32 = arith.constant 4 : i32
    %48 = vector.broadcast %c4_i32 : i32 to vector<8x1xi32>
    %49 = arith.andi %47, %48 : vector<8x1xi32>
    %c0_i32_30 = arith.constant 0 : i32
    %50 = vector.broadcast %c0_i32_30 : i32 to vector<8x1xi32>
    %51 = arith.cmpi ne, %49, %50 : vector<8x1xi32>
    %c6_i32 = arith.constant 6 : i32
    %52 = vector.broadcast %c6_i32 : i32 to vector<8x1xi32>
    %53 = arith.subi %52, %30 : vector<8x1xi32>
    %c0_i32_31 = arith.constant 0 : i32
    %54 = vector.broadcast %c0_i32_31 : i32 to vector<8x1xi32>
    %55 = arith.maxsi %53, %54 : vector<8x1xi32>
    %c1_i32_32 = arith.constant 1 : i32
    %56 = vector.broadcast %c1_i32_32 : i32 to vector<8x1xi32>
    %57 = arith.andi %55, %56 : vector<8x1xi32>
    %c0_i32_33 = arith.constant 0 : i32
    %58 = vector.broadcast %c0_i32_33 : i32 to vector<8x1xi32>
    %59 = arith.cmpi ne, %57, %58 : vector<8x1xi32>
    %c6_i32_34 = arith.constant 6 : i32
    %60 = vector.broadcast %c6_i32_34 : i32 to vector<8x1xi32>
    %61 = arith.subi %60, %30 : vector<8x1xi32>
    %c0_i32_35 = arith.constant 0 : i32
    %62 = vector.broadcast %c0_i32_35 : i32 to vector<8x1xi32>
    %63 = arith.maxsi %61, %62 : vector<8x1xi32>
    %c2_i32_36 = arith.constant 2 : i32
    %64 = vector.broadcast %c2_i32_36 : i32 to vector<8x1xi32>
    %65 = arith.andi %63, %64 : vector<8x1xi32>
    %c0_i32_37 = arith.constant 0 : i32
    %66 = vector.broadcast %c0_i32_37 : i32 to vector<8x1xi32>
    %67 = arith.cmpi ne, %65, %66 : vector<8x1xi32>
    %c6_i32_38 = arith.constant 6 : i32
    %68 = vector.broadcast %c6_i32_38 : i32 to vector<8x1xi32>
    %69 = arith.subi %68, %30 : vector<8x1xi32>
    %c0_i32_39 = arith.constant 0 : i32
    %70 = vector.broadcast %c0_i32_39 : i32 to vector<8x1xi32>
    %71 = arith.maxsi %69, %70 : vector<8x1xi32>
    %c4_i32_40 = arith.constant 4 : i32
    %72 = vector.broadcast %c4_i32_40 : i32 to vector<8x1xi32>
    %73 = arith.andi %71, %72 : vector<8x1xi32>
    %c0_i32_41 = arith.constant 0 : i32
    %74 = vector.broadcast %c0_i32_41 : i32 to vector<8x1xi32>
    %75 = arith.cmpi ne, %73, %74 : vector<8x1xi32>
    %76 = vector.broadcast %33 : vector<8x1xi32> to vector<8x16xi32>
    %77 = arith.cmpi sle, %31, %76 : vector<8x16xi32>
    %c1_i32_42 = arith.constant 1 : i32
    %78 = vector.broadcast %c1_i32_42 : i32 to vector<8x1xi32>
    %79 = arith.addi %33, %78 : vector<8x1xi32>
    %80 = vector.broadcast %79 : vector<8x1xi32> to vector<8x16xi32>
    %81 = arith.cmpi eq, %31, %80 : vector<8x16xi32>
    %cst_43 = arith.constant 0.000000e+00 : f32
    %82 = vector.broadcast %cst_43 : f32 to vector<8x16xf32>
    %83 = vector.extract_strided_slice %21 {offsets = [0, 0], sizes = [8, 8], strides = [1, 1]} : vector<8x32xbf16> to vector<8x8xbf16>
    %84 = vector.extract_strided_slice %9 {offsets = [0, 0], sizes = [16, 8], strides = [1, 1]} : vector<16x32xbf16> to vector<16x8xbf16>
    %cst_44 = arith.constant dense<0.000000e+00> : vector<8x16xf32>
    %85 = tpu.matmul %83, %84, %cst_44 {dimension_numbers = #tpu.dot_dimension_numbers<[1], [1], [0], [0], [0, 0, 1, 0], [], []>} : vector<8x8xbf16>, vector<16x8xbf16>, vector<8x16xf32> -> vector<8x16xf32>
    %86 = vector.extract_strided_slice %27 {offsets = [0, 0], sizes = [8, 8], strides = [1, 1]} : vector<8x32xbf16> to vector<8x8xbf16>
    %87 = vector.extract_strided_slice %15 {offsets = [0, 0], sizes = [16, 8], strides = [1, 1]} : vector<16x32xbf16> to vector<16x8xbf16>
    %cst_45 = arith.constant dense<0.000000e+00> : vector<8x16xf32>
    %88 = tpu.matmul %86, %87, %cst_45 {dimension_numbers = #tpu.dot_dimension_numbers<[1], [1], [0], [0], [0, 0, 1, 0], [], []>} : vector<8x8xbf16>, vector<16x8xbf16>, vector<8x16xf32> -> vector<8x16xf32>
    %89 = vector.extract_strided_slice %88 {offsets = [0, 1], sizes = [8, 15], strides = [1, 1]} : vector<8x16xf32> to vector<8x15xf32>
    %90 = vector.extract_strided_slice %88 {offsets = [0, 0], sizes = [8, 1], strides = [1, 1]} : vector<8x16xf32> to vector<8x1xf32>
    %91 = tpu.concatenate %89, %90 in 1 : vector<8x15xf32>, vector<8x1xf32> -> vector<8x16xf32>
    %92 = vector.shape_cast %39 : vector<8x1xi1> to vector<8x1xi1>
    %93 = vector.broadcast %92 : vector<8x1xi1> to vector<8x16xi1>
    %94 = arith.select %93, %91, %88 : vector<8x16xi1>, vector<8x16xf32>
    %95 = vector.extract_strided_slice %94 {offsets = [0, 2], sizes = [8, 14], strides = [1, 1]} : vector<8x16xf32> to vector<8x14xf32>
    %96 = vector.extract_strided_slice %94 {offsets = [0, 0], sizes = [8, 2], strides = [1, 1]} : vector<8x16xf32> to vector<8x2xf32>
    %97 = tpu.concatenate %95, %96 in 1 : vector<8x14xf32>, vector<8x2xf32> -> vector<8x16xf32>
    %98 = vector.shape_cast %45 : vector<8x1xi1> to vector<8x1xi1>
    %99 = vector.broadcast %98 : vector<8x1xi1> to vector<8x16xi1>
    %100 = arith.select %99, %97, %94 : vector<8x16xi1>, vector<8x16xf32>
    %101 = vector.extract_strided_slice %100 {offsets = [0, 4], sizes = [8, 12], strides = [1, 1]} : vector<8x16xf32> to vector<8x12xf32>
    %102 = vector.extract_strided_slice %100 {offsets = [0, 0], sizes = [8, 4], strides = [1, 1]} : vector<8x16xf32> to vector<8x4xf32>
    %103 = tpu.concatenate %101, %102 in 1 : vector<8x12xf32>, vector<8x4xf32> -> vector<8x16xf32>
    %104 = vector.shape_cast %51 : vector<8x1xi1> to vector<8x1xi1>
    %105 = vector.broadcast %104 : vector<8x1xi1> to vector<8x16xi1>
    %106 = arith.select %105, %103, %100 : vector<8x16xi1>, vector<8x16xf32>
    %107 = vector.extract_strided_slice %88 {offsets = [1, 0], sizes = [7, 16], strides = [1, 1]} : vector<8x16xf32> to vector<7x16xf32>
    %108 = vector.extract_strided_slice %82 {offsets = [0, 0], sizes = [1, 16], strides = [1, 1]} : vector<8x16xf32> to vector<1x16xf32>
    %109 = tpu.concatenate %107, %108 in 0 : vector<7x16xf32>, vector<1x16xf32> -> vector<8x16xf32>
    %110 = vector.extract_strided_slice %109 {offsets = [0, 1], sizes = [8, 15], strides = [1, 1]} : vector<8x16xf32> to vector<8x15xf32>
    %111 = vector.extract_strided_slice %109 {offsets = [0, 0], sizes = [8, 1], strides = [1, 1]} : vector<8x16xf32> to vector<8x1xf32>
    %112 = tpu.concatenate %110, %111 in 1 : vector<8x15xf32>, vector<8x1xf32> -> vector<8x16xf32>
    %113 = vector.shape_cast %59 : vector<8x1xi1> to vector<8x1xi1>
    %114 = vector.broadcast %113 : vector<8x1xi1> to vector<8x16xi1>
    %115 = arith.select %114, %112, %109 : vector<8x16xi1>, vector<8x16xf32>
    %116 = vector.extract_strided_slice %115 {offsets = [0, 2], sizes = [8, 14], strides = [1, 1]} : vector<8x16xf32> to vector<8x14xf32>
    %117 = vector.extract_strided_slice %115 {offsets = [0, 0], sizes = [8, 2], strides = [1, 1]} : vector<8x16xf32> to vector<8x2xf32>
    %118 = tpu.concatenate %116, %117 in 1 : vector<8x14xf32>, vector<8x2xf32> -> vector<8x16xf32>
    %119 = vector.shape_cast %67 : vector<8x1xi1> to vector<8x1xi1>
    %120 = vector.broadcast %119 : vector<8x1xi1> to vector<8x16xi1>
    %121 = arith.select %120, %118, %115 : vector<8x16xi1>, vector<8x16xf32>
    %122 = vector.extract_strided_slice %121 {offsets = [0, 4], sizes = [8, 12], strides = [1, 1]} : vector<8x16xf32> to vector<8x12xf32>
    %123 = vector.extract_strided_slice %121 {offsets = [0, 0], sizes = [8, 4], strides = [1, 1]} : vector<8x16xf32> to vector<8x4xf32>
    %124 = tpu.concatenate %122, %123 in 1 : vector<8x12xf32>, vector<8x4xf32> -> vector<8x16xf32>
    %125 = vector.shape_cast %75 : vector<8x1xi1> to vector<8x1xi1>
    %126 = vector.broadcast %125 : vector<8x1xi1> to vector<8x16xi1>
    %127 = arith.select %126, %124, %121 : vector<8x16xi1>, vector<8x16xf32>
    %128 = arith.select %81, %82, %127 : vector<8x16xi1>, vector<8x16xf32>
    %129 = arith.select %77, %106, %128 : vector<8x16xi1>, vector<8x16xf32>
    %130 = arith.addf %85, %129 : vector<8x16xf32>
    %131 = arith.addf %130, %28 : vector<8x16xf32>
    %cst_46 = arith.constant dense<0xFF800000> : vector<8xf32>
    %132 = vector.multi_reduction <maximumf>, %131, %cst_46 [1] : vector<8x16xf32> to vector<8xf32>
    %133 = vector.shape_cast %132 : vector<8xf32> to vector<8x1xf32>
    %134 = vector.broadcast %133 : vector<8x1xf32> to vector<8x16xf32>
    %135 = arith.subf %131, %134 : vector<8x16xf32>
    %136 = math.exp %135 : vector<8x16xf32>
    %cst_47 = arith.constant dense<0.000000e+00> : vector<8xf32>
    %137 = vector.multi_reduction <add>, %136, %cst_47 [1] : vector<8x16xf32> to vector<8xf32>
    %138 = vector.shape_cast %137 : vector<8xf32> to vector<8x1xf32>
    %139 = tpu.reciprocal %138 {approx = true} : vector<8x1xf32> -> vector<8x1xf32>
    %140 = vector.broadcast %139 : vector<8x1xf32> to vector<8x16xf32>
    %141 = arith.mulf %136, %140 : vector<8x16xf32>
    %142 = arith.truncf %141 : vector<8x16xf32> to vector<8x16xbf16>
    %143 = vector.extract_strided_slice %12 {offsets = [0, 0], sizes = [16, 8], strides = [1, 1]} : vector<16x32xbf16> to vector<16x8xbf16>
    %cst_48 = arith.constant dense<0.000000e+00> : vector<8x8xf32>
    %144 = tpu.matmul %142, %143, %cst_48 {dimension_numbers = #tpu.dot_dimension_numbers<[1], [0], [0], [1], [0, 0, 1, 1], [], []>} : vector<8x16xbf16>, vector<16x8xbf16>, vector<8x8xf32> -> vector<8x8xf32>
    %145 = arith.truncf %144 : vector<8x8xf32> to vector<8x8xbf16>
    %146 = vector.extract_strided_slice %29 {offsets = [0, 0], sizes = [8, 32], strides = [1, 1]} : vector<32x32xbf16> to vector<8x32xbf16>
    %cst_49 = arith.constant dense<0.000000e+00> : vector<8x32xf32>
    %147 = tpu.matmul %145, %146, %cst_49 {dimension_numbers = #tpu.dot_dimension_numbers<[1], [0], [0], [1], [0, 0, 1, 1], [], []>} : vector<8x8xbf16>, vector<8x32xbf16>, vector<8x32xf32> -> vector<8x32xf32>
    %c0_50 = arith.constant 0 : index
    %c0_51 = arith.constant 0 : index
    %148 = vector.load %arg12[%c0_50, %c0_51] : memref<8x32xf32, #tpu.memory_space<vmem>>, vector<8x32xf32>
    tpu.vector_store %arg12[%c0_50, %c0_51], %147 {strides = array<i32>} : memref<8x32xf32, #tpu.memory_space<vmem>>, vector<8x32xf32>,
    %149 = vector.extract_strided_slice %21 {offsets = [0, 8], sizes = [8, 8], strides = [1, 1]} : vector<8x32xbf16> to vector<8x8xbf16>
    %150 = vector.extract_strided_slice %9 {offsets = [0, 8], sizes = [16, 8], strides = [1, 1]} : vector<16x32xbf16> to vector<16x8xbf16>
    %cst_52 = arith.constant dense<0.000000e+00> : vector<8x16xf32>
    %151 = tpu.matmul %149, %150, %cst_52 {dimension_numbers = #tpu.dot_dimension_numbers<[1], [1], [0], [0], [0, 0, 1, 0], [], []>} : vector<8x8xbf16>, vector<16x8xbf16>, vector<8x16xf32> -> vector<8x16xf32>
    %152 = vector.extract_strided_slice %27 {offsets = [0, 8], sizes = [8, 8], strides = [1, 1]} : vector<8x32xbf16> to vector<8x8xbf16>
    %153 = vector.extract_strided_slice %15 {offsets = [0, 8], sizes = [16, 8], strides = [1, 1]} : vector<16x32xbf16> to vector<16x8xbf16>
    %cst_53 = arith.constant dense<0.000000e+00> : vector<8x16xf32>
    %154 = tpu.matmul %152, %153, %cst_53 {dimension_numbers = #tpu.dot_dimension_numbers<[1], [1], [0], [0], [0, 0, 1, 0], [], []>} : vector<8x8xbf16>, vector<16x8xbf16>, vector<8x16xf32> -> vector<8x16xf32>
    %155 = vector.extract_strided_slice %154 {offsets = [0, 1], sizes = [8, 15], strides = [1, 1]} : vector<8x16xf32> to vector<8x15xf32>
    %156 = vector.extract_strided_slice %154 {offsets = [0, 0], sizes = [8, 1], strides = [1, 1]} : vector<8x16xf32> to vector<8x1xf32>
    %157 = tpu.concatenate %155, %156 in 1 : vector<8x15xf32>, vector<8x1xf32> -> vector<8x16xf32>
    %158 = vector.shape_cast %39 : vector<8x1xi1> to vector<8x1xi1>
    %159 = vector.broadcast %158 : vector<8x1xi1> to vector<8x16xi1>
    %160 = arith.select %159, %157, %154 : vector<8x16xi1>, vector<8x16xf32>
    %161 = vector.extract_strided_slice %160 {offsets = [0, 2], sizes = [8, 14], strides = [1, 1]} : vector<8x16xf32> to vector<8x14xf32>
    %162 = vector.extract_strided_slice %160 {offsets = [0, 0], sizes = [8, 2], strides = [1, 1]} : vector<8x16xf32> to vector<8x2xf32>
    %163 = tpu.concatenate %161, %162 in 1 : vector<8x14xf32>, vector<8x2xf32> -> vector<8x16xf32>
    %164 = vector.shape_cast %45 : vector<8x1xi1> to vector<8x1xi1>
    %165 = vector.broadcast %164 : vector<8x1xi1> to vector<8x16xi1>
    %166 = arith.select %165, %163, %160 : vector<8x16xi1>, vector<8x16xf32>
    %167 = vector.extract_strided_slice %166 {offsets = [0, 4], sizes = [8, 12], strides = [1, 1]} : vector<8x16xf32> to vector<8x12xf32>
    %168 = vector.extract_strided_slice %166 {offsets = [0, 0], sizes = [8, 4], strides = [1, 1]} : vector<8x16xf32> to vector<8x4xf32>
    %169 = tpu.concatenate %167, %168 in 1 : vector<8x12xf32>, vector<8x4xf32> -> vector<8x16xf32>
    %170 = vector.shape_cast %51 : vector<8x1xi1> to vector<8x1xi1>
    %171 = vector.broadcast %170 : vector<8x1xi1> to vector<8x16xi1>
    %172 = arith.select %171, %169, %166 : vector<8x16xi1>, vector<8x16xf32>
    %173 = vector.extract_strided_slice %154 {offsets = [1, 0], sizes = [7, 16], strides = [1, 1]} : vector<8x16xf32> to vector<7x16xf32>
    %174 = vector.extract_strided_slice %82 {offsets = [0, 0], sizes = [1, 16], strides = [1, 1]} : vector<8x16xf32> to vector<1x16xf32>
    %175 = tpu.concatenate %173, %174 in 0 : vector<7x16xf32>, vector<1x16xf32> -> vector<8x16xf32>
    %176 = vector.extract_strided_slice %175 {offsets = [0, 1], sizes = [8, 15], strides = [1, 1]} : vector<8x16xf32> to vector<8x15xf32>
    %177 = vector.extract_strided_slice %175 {offsets = [0, 0], sizes = [8, 1], strides = [1, 1]} : vector<8x16xf32> to vector<8x1xf32>
    %178 = tpu.concatenate %176, %177 in 1 : vector<8x15xf32>, vector<8x1xf32> -> vector<8x16xf32>
    %179 = vector.shape_cast %59 : vector<8x1xi1> to vector<8x1xi1>
    %180 = vector.broadcast %179 : vector<8x1xi1> to vector<8x16xi1>
    %181 = arith.select %180, %178, %175 : vector<8x16xi1>, vector<8x16xf32>
    %182 = vector.extract_strided_slice %181 {offsets = [0, 2], sizes = [8, 14], strides = [1, 1]} : vector<8x16xf32> to vector<8x14xf32>
    %183 = vector.extract_strided_slice %181 {offsets = [0, 0], sizes = [8, 2], strides = [1, 1]} : vector<8x16xf32> to vector<8x2xf32>
    %184 = tpu.concatenate %182, %183 in 1 : vector<8x14xf32>, vector<8x2xf32> -> vector<8x16xf32>
    %185 = vector.shape_cast %67 : vector<8x1xi1> to vector<8x1xi1>
    %186 = vector.broadcast %185 : vector<8x1xi1> to vector<8x16xi1>
    %187 = arith.select %186, %184, %181 : vector<8x16xi1>, vector<8x16xf32>
    %188 = vector.extract_strided_slice %187 {offsets = [0, 4], sizes = [8, 12], strides = [1, 1]} : vector<8x16xf32> to vector<8x12xf32>
    %189 = vector.extract_strided_slice %187 {offsets = [0, 0], sizes = [8, 4], strides = [1, 1]} : vector<8x16xf32> to vector<8x4xf32>
    %190 = tpu.concatenate %188, %189 in 1 : vector<8x12xf32>, vector<8x4xf32> -> vector<8x16xf32>
    %191 = vector.shape_cast %75 : vector<8x1xi1> to vector<8x1xi1>
    %192 = vector.broadcast %191 : vector<8x1xi1> to vector<8x16xi1>
    %193 = arith.select %192, %190, %187 : vector<8x16xi1>, vector<8x16xf32>
    %194 = arith.select %81, %82, %193 : vector<8x16xi1>, vector<8x16xf32>
    %195 = arith.select %77, %172, %194 : vector<8x16xi1>, vector<8x16xf32>
    %196 = arith.addf %151, %195 : vector<8x16xf32>
    %197 = arith.addf %196, %28 : vector<8x16xf32>
    %cst_54 = arith.constant dense<0xFF800000> : vector<8xf32>
    %198 = vector.multi_reduction <maximumf>, %197, %cst_54 [1] : vector<8x16xf32> to vector<8xf32>
    %199 = vector.shape_cast %198 : vector<8xf32> to vector<8x1xf32>
    %200 = vector.broadcast %199 : vector<8x1xf32> to vector<8x16xf32>
    %201 = arith.subf %197, %200 : vector<8x16xf32>
    %202 = math.exp %201 : vector<8x16xf32>
    %cst_55 = arith.constant dense<0.000000e+00> : vector<8xf32>
    %203 = vector.multi_reduction <add>, %202, %cst_55 [1] : vector<8x16xf32> to vector<8xf32>
    %204 = vector.shape_cast %203 : vector<8xf32> to vector<8x1xf32>
    %205 = tpu.reciprocal %204 {approx = true} : vector<8x1xf32> -> vector<8x1xf32>
    %206 = vector.broadcast %205 : vector<8x1xf32> to vector<8x16xf32>
    %207 = arith.mulf %202, %206 : vector<8x16xf32>
    %208 = arith.truncf %207 : vector<8x16xf32> to vector<8x16xbf16>
    %209 = vector.extract_strided_slice %12 {offsets = [0, 8], sizes = [16, 8], strides = [1, 1]} : vector<16x32xbf16> to vector<16x8xbf16>
    %cst_56 = arith.constant dense<0.000000e+00> : vector<8x8xf32>
    %210 = tpu.matmul %208, %209, %cst_56 {dimension_numbers = #tpu.dot_dimension_numbers<[1], [0], [0], [1], [0, 0, 1, 1], [], []>} : vector<8x16xbf16>, vector<16x8xbf16>, vector<8x8xf32> -> vector<8x8xf32>
    %211 = arith.truncf %210 : vector<8x8xf32> to vector<8x8xbf16>
    %212 = vector.extract_strided_slice %29 {offsets = [8, 0], sizes = [8, 32], strides = [1, 1]} : vector<32x32xbf16> to vector<8x32xbf16>
    %cst_57 = arith.constant dense<0.000000e+00> : vector<8x32xf32>
    %213 = tpu.matmul %211, %212, %cst_57 {dimension_numbers = #tpu.dot_dimension_numbers<[1], [0], [0], [1], [0, 0, 1, 1], [], []>} : vector<8x8xbf16>, vector<8x32xbf16>, vector<8x32xf32> -> vector<8x32xf32>
    %c0_58 = arith.constant 0 : index
    %c0_59 = arith.constant 0 : index
    %214 = vector.load %arg12[%c0_58, %c0_59] : memref<8x32xf32, #tpu.memory_space<vmem>>, vector<8x32xf32>
    %215 = arith.addf %214, %213 : vector<8x32xf32>
    %c0_60 = arith.constant 0 : index
    %c0_61 = arith.constant 0 : index
    %216 = vector.load %arg12[%c0_60, %c0_61] : memref<8x32xf32, #tpu.memory_space<vmem>>, vector<8x32xf32>
    tpu.vector_store %arg12[%c0_60, %c0_61], %215 {strides = array<i32>} : memref<8x32xf32, #tpu.memory_space<vmem>>, vector<8x32xf32>,
    %217 = vector.extract_strided_slice %21 {offsets = [0, 16], sizes = [8, 8], strides = [1, 1]} : vector<8x32xbf16> to vector<8x8xbf16>
    %218 = vector.extract_strided_slice %9 {offsets = [0, 16], sizes = [16, 8], strides = [1, 1]} : vector<16x32xbf16> to vector<16x8xbf16>
    %cst_62 = arith.constant dense<0.000000e+00> : vector<8x16xf32>
    %219 = tpu.matmul %217, %218, %cst_62 {dimension_numbers = #tpu.dot_dimension_numbers<[1], [1], [0], [0], [0, 0, 1, 0], [], []>} : vector<8x8xbf16>, vector<16x8xbf16>, vector<8x16xf32> -> vector<8x16xf32>
    %220 = vector.extract_strided_slice %27 {offsets = [0, 16], sizes = [8, 8], strides = [1, 1]} : vector<8x32xbf16> to vector<8x8xbf16>
    %221 = vector.extract_strided_slice %15 {offsets = [0, 16], sizes = [16, 8], strides = [1, 1]} : vector<16x32xbf16> to vector<16x8xbf16>
    %cst_63 = arith.constant dense<0.000000e+00> : vector<8x16xf32>
    %222 = tpu.matmul %220, %221, %cst_63 {dimension_numbers = #tpu.dot_dimension_numbers<[1], [1], [0], [0], [0, 0, 1, 0], [], []>} : vector<8x8xbf16>, vector<16x8xbf16>, vector<8x16xf32> -> vector<8x16xf32>
    %223 = vector.extract_strided_slice %222 {offsets = [0, 1], sizes = [8, 15], strides = [1, 1]} : vector<8x16xf32> to vector<8x15xf32>
    %224 = vector.extract_strided_slice %222 {offsets = [0, 0], sizes = [8, 1], strides = [1, 1]} : vector<8x16xf32> to vector<8x1xf32>
    %225 = tpu.concatenate %223, %224 in 1 : vector<8x15xf32>, vector<8x1xf32> -> vector<8x16xf32>
    %226 = vector.shape_cast %39 : vector<8x1xi1> to vector<8x1xi1>
    %227 = vector.broadcast %226 : vector<8x1xi1> to vector<8x16xi1>
    %228 = arith.select %227, %225, %222 : vector<8x16xi1>, vector<8x16xf32>
    %229 = vector.extract_strided_slice %228 {offsets = [0, 2], sizes = [8, 14], strides = [1, 1]} : vector<8x16xf32> to vector<8x14xf32>
    %230 = vector.extract_strided_slice %228 {offsets = [0, 0], sizes = [8, 2], strides = [1, 1]} : vector<8x16xf32> to vector<8x2xf32>
    %231 = tpu.concatenate %229, %230 in 1 : vector<8x14xf32>, vector<8x2xf32> -> vector<8x16xf32>
    %232 = vector.shape_cast %45 : vector<8x1xi1> to vector<8x1xi1>
    %233 = vector.broadcast %232 : vector<8x1xi1> to vector<8x16xi1>
    %234 = arith.select %233, %231, %228 : vector<8x16xi1>, vector<8x16xf32>
    %235 = vector.extract_strided_slice %234 {offsets = [0, 4], sizes = [8, 12], strides = [1, 1]} : vector<8x16xf32> to vector<8x12xf32>
    %236 = vector.extract_strided_slice %234 {offsets = [0, 0], sizes = [8, 4], strides = [1, 1]} : vector<8x16xf32> to vector<8x4xf32>
    %237 = tpu.concatenate %235, %236 in 1 : vector<8x12xf32>, vector<8x4xf32> -> vector<8x16xf32>
    %238 = vector.shape_cast %51 : vector<8x1xi1> to vector<8x1xi1>
    %239 = vector.broadcast %238 : vector<8x1xi1> to vector<8x16xi1>
    %240 = arith.select %239, %237, %234 : vector<8x16xi1>, vector<8x16xf32>
    %241 = vector.extract_strided_slice %222 {offsets = [1, 0], sizes = [7, 16], strides = [1, 1]} : vector<8x16xf32> to vector<7x16xf32>
    %242 = vector.extract_strided_slice %82 {offsets = [0, 0], sizes = [1, 16], strides = [1, 1]} : vector<8x16xf32> to vector<1x16xf32>
    %243 = tpu.concatenate %241, %242 in 0 : vector<7x16xf32>, vector<1x16xf32> -> vector<8x16xf32>
    %244 = vector.extract_strided_slice %243 {offsets = [0, 1], sizes = [8, 15], strides = [1, 1]} : vector<8x16xf32> to vector<8x15xf32>
    %245 = vector.extract_strided_slice %243 {offsets = [0, 0], sizes = [8, 1], strides = [1, 1]} : vector<8x16xf32> to vector<8x1xf32>
    %246 = tpu.concatenate %244, %245 in 1 : vector<8x15xf32>, vector<8x1xf32> -> vector<8x16xf32>
    %247 = vector.shape_cast %59 : vector<8x1xi1> to vector<8x1xi1>
    %248 = vector.broadcast %247 : vector<8x1xi1> to vector<8x16xi1>
    %249 = arith.select %248, %246, %243 : vector<8x16xi1>, vector<8x16xf32>
    %250 = vector.extract_strided_slice %249 {offsets = [0, 2], sizes = [8, 14], strides = [1, 1]} : vector<8x16xf32> to vector<8x14xf32>
    %251 = vector.extract_strided_slice %249 {offsets = [0, 0], sizes = [8, 2], strides = [1, 1]} : vector<8x16xf32> to vector<8x2xf32>
    %252 = tpu.concatenate %250, %251 in 1 : vector<8x14xf32>, vector<8x2xf32> -> vector<8x16xf32>
    %253 = vector.shape_cast %67 : vector<8x1xi1> to vector<8x1xi1>
    %254 = vector.broadcast %253 : vector<8x1xi1> to vector<8x16xi1>
    %255 = arith.select %254, %252, %249 : vector<8x16xi1>, vector<8x16xf32>
    %256 = vector.extract_strided_slice %255 {offsets = [0, 4], sizes = [8, 12], strides = [1, 1]} : vector<8x16xf32> to vector<8x12xf32>
    %257 = vector.extract_strided_slice %255 {offsets = [0, 0], sizes = [8, 4], strides = [1, 1]} : vector<8x16xf32> to vector<8x4xf32>
    %258 = tpu.concatenate %256, %257 in 1 : vector<8x12xf32>, vector<8x4xf32> -> vector<8x16xf32>
    %259 = vector.shape_cast %75 : vector<8x1xi1> to vector<8x1xi1>
    %260 = vector.broadcast %259 : vector<8x1xi1> to vector<8x16xi1>
    %261 = arith.select %260, %258, %255 : vector<8x16xi1>, vector<8x16xf32>
    %262 = arith.select %81, %82, %261 : vector<8x16xi1>, vector<8x16xf32>
    %263 = arith.select %77, %240, %262 : vector<8x16xi1>, vector<8x16xf32>
    %264 = arith.addf %219, %263 : vector<8x16xf32>
    %265 = arith.addf %264, %28 : vector<8x16xf32>
    %cst_64 = arith.constant dense<0xFF800000> : vector<8xf32>
    %266 = vector.multi_reduction <maximumf>, %265, %cst_64 [1] : vector<8x16xf32> to vector<8xf32>
    %267 = vector.shape_cast %266 : vector<8xf32> to vector<8x1xf32>
    %268 = vector.broadcast %267 : vector<8x1xf32> to vector<8x16xf32>
    %269 = arith.subf %265, %268 : vector<8x16xf32>
    %270 = math.exp %269 : vector<8x16xf32>
    %cst_65 = arith.constant dense<0.000000e+00> : vector<8xf32>
    %271 = vector.multi_reduction <add>, %270, %cst_65 [1] : vector<8x16xf32> to vector<8xf32>
    %272 = vector.shape_cast %271 : vector<8xf32> to vector<8x1xf32>
    %273 = tpu.reciprocal %272 {approx = true} : vector<8x1xf32> -> vector<8x1xf32>
    %274 = vector.broadcast %273 : vector<8x1xf32> to vector<8x16xf32>
    %275 = arith.mulf %270, %274 : vector<8x16xf32>
    %276 = arith.truncf %275 : vector<8x16xf32> to vector<8x16xbf16>
    %277 = vector.extract_strided_slice %12 {offsets = [0, 16], sizes = [16, 8], strides = [1, 1]} : vector<16x32xbf16> to vector<16x8xbf16>
    %cst_66 = arith.constant dense<0.000000e+00> : vector<8x8xf32>
    %278 = tpu.matmul %276, %277, %cst_66 {dimension_numbers = #tpu.dot_dimension_numbers<[1], [0], [0], [1], [0, 0, 1, 1], [], []>} : vector<8x16xbf16>, vector<16x8xbf16>, vector<8x8xf32> -> vector<8x8xf32>
    %279 = arith.truncf %278 : vector<8x8xf32> to vector<8x8xbf16>
    %280 = vector.extract_strided_slice %29 {offsets = [16, 0], sizes = [8, 32], strides = [1, 1]} : vector<32x32xbf16> to vector<8x32xbf16>
    %cst_67 = arith.constant dense<0.000000e+00> : vector<8x32xf32>
    %281 = tpu.matmul %279, %280, %cst_67 {dimension_numbers = #tpu.dot_dimension_numbers<[1], [0], [0], [1], [0, 0, 1, 1], [], []>} : vector<8x8xbf16>, vector<8x32xbf16>, vector<8x32xf32> -> vector<8x32xf32>
    %c0_68 = arith.constant 0 : index
    %c0_69 = arith.constant 0 : index
    %282 = vector.load %arg12[%c0_68, %c0_69] : memref<8x32xf32, #tpu.memory_space<vmem>>, vector<8x32xf32>
    %283 = arith.addf %282, %281 : vector<8x32xf32>
    %c0_70 = arith.constant 0 : index
    %c0_71 = arith.constant 0 : index
    %284 = vector.load %arg12[%c0_70, %c0_71] : memref<8x32xf32, #tpu.memory_space<vmem>>, vector<8x32xf32>
    tpu.vector_store %arg12[%c0_70, %c0_71], %283 {strides = array<i32>} : memref<8x32xf32, #tpu.memory_space<vmem>>, vector<8x32xf32>,
    %285 = vector.extract_strided_slice %21 {offsets = [0, 24], sizes = [8, 8], strides = [1, 1]} : vector<8x32xbf16> to vector<8x8xbf16>
    %286 = vector.extract_strided_slice %9 {offsets = [0, 24], sizes = [16, 8], strides = [1, 1]} : vector<16x32xbf16> to vector<16x8xbf16>
    %cst_72 = arith.constant dense<0.000000e+00> : vector<8x16xf32>
    %287 = tpu.matmul %285, %286, %cst_72 {dimension_numbers = #tpu.dot_dimension_numbers<[1], [1], [0], [0], [0, 0, 1, 0], [], []>} : vector<8x8xbf16>, vector<16x8xbf16>, vector<8x16xf32> -> vector<8x16xf32>
    %288 = vector.extract_strided_slice %27 {offsets = [0, 24], sizes = [8, 8], strides = [1, 1]} : vector<8x32xbf16> to vector<8x8xbf16>
    %289 = vector.extract_strided_slice %15 {offsets = [0, 24], sizes = [16, 8], strides = [1, 1]} : vector<16x32xbf16> to vector<16x8xbf16>
    %cst_73 = arith.constant dense<0.000000e+00> : vector<8x16xf32>
    %290 = tpu.matmul %288, %289, %cst_73 {dimension_numbers = #tpu.dot_dimension_numbers<[1], [1], [0], [0], [0, 0, 1, 0], [], []>} : vector<8x8xbf16>, vector<16x8xbf16>, vector<8x16xf32> -> vector<8x16xf32>
    %291 = vector.extract_strided_slice %290 {offsets = [0, 1], sizes = [8, 15], strides = [1, 1]} : vector<8x16xf32> to vector<8x15xf32>
    %292 = vector.extract_strided_slice %290 {offsets = [0, 0], sizes = [8, 1], strides = [1, 1]} : vector<8x16xf32> to vector<8x1xf32>
    %293 = tpu.concatenate %291, %292 in 1 : vector<8x15xf32>, vector<8x1xf32> -> vector<8x16xf32>
    %294 = vector.shape_cast %39 : vector<8x1xi1> to vector<8x1xi1>
    %295 = vector.broadcast %294 : vector<8x1xi1> to vector<8x16xi1>
    %296 = arith.select %295, %293, %290 : vector<8x16xi1>, vector<8x16xf32>
    %297 = vector.extract_strided_slice %296 {offsets = [0, 2], sizes = [8, 14], strides = [1, 1]} : vector<8x16xf32> to vector<8x14xf32>
    %298 = vector.extract_strided_slice %296 {offsets = [0, 0], sizes = [8, 2], strides = [1, 1]} : vector<8x16xf32> to vector<8x2xf32>
    %299 = tpu.concatenate %297, %298 in 1 : vector<8x14xf32>, vector<8x2xf32> -> vector<8x16xf32>
    %300 = vector.shape_cast %45 : vector<8x1xi1> to vector<8x1xi1>
    %301 = vector.broadcast %300 : vector<8x1xi1> to vector<8x16xi1>
    %302 = arith.select %301, %299, %296 : vector<8x16xi1>, vector<8x16xf32>
    %303 = vector.extract_strided_slice %302 {offsets = [0, 4], sizes = [8, 12], strides = [1, 1]} : vector<8x16xf32> to vector<8x12xf32>
    %304 = vector.extract_strided_slice %302 {offsets = [0, 0], sizes = [8, 4], strides = [1, 1]} : vector<8x16xf32> to vector<8x4xf32>
    %305 = tpu.concatenate %303, %304 in 1 : vector<8x12xf32>, vector<8x4xf32> -> vector<8x16xf32>
    %306 = vector.shape_cast %51 : vector<8x1xi1> to vector<8x1xi1>
    %307 = vector.broadcast %306 : vector<8x1xi1> to vector<8x16xi1>
    %308 = arith.select %307, %305, %302 : vector<8x16xi1>, vector<8x16xf32>
    %309 = vector.extract_strided_slice %290 {offsets = [1, 0], sizes = [7, 16], strides = [1, 1]} : vector<8x16xf32> to vector<7x16xf32>
    %310 = vector.extract_strided_slice %82 {offsets = [0, 0], sizes = [1, 16], strides = [1, 1]} : vector<8x16xf32> to vector<1x16xf32>
    %311 = tpu.concatenate %309, %310 in 0 : vector<7x16xf32>, vector<1x16xf32> -> vector<8x16xf32>
    %312 = vector.extract_strided_slice %311 {offsets = [0, 1], sizes = [8, 15], strides = [1, 1]} : vector<8x16xf32> to vector<8x15xf32>
    %313 = vector.extract_strided_slice %311 {offsets = [0, 0], sizes = [8, 1], strides = [1, 1]} : vector<8x16xf32> to vector<8x1xf32>
    %314 = tpu.concatenate %312, %313 in 1 : vector<8x15xf32>, vector<8x1xf32> -> vector<8x16xf32>
    %315 = vector.shape_cast %59 : vector<8x1xi1> to vector<8x1xi1>
    %316 = vector.broadcast %315 : vector<8x1xi1> to vector<8x16xi1>
    %317 = arith.select %316, %314, %311 : vector<8x16xi1>, vector<8x16xf32>
    %318 = vector.extract_strided_slice %317 {offsets = [0, 2], sizes = [8, 14], strides = [1, 1]} : vector<8x16xf32> to vector<8x14xf32>
    %319 = vector.extract_strided_slice %317 {offsets = [0, 0], sizes = [8, 2], strides = [1, 1]} : vector<8x16xf32> to vector<8x2xf32>
    %320 = tpu.concatenate %318, %319 in 1 : vector<8x14xf32>, vector<8x2xf32> -> vector<8x16xf32>
    %321 = vector.shape_cast %67 : vector<8x1xi1> to vector<8x1xi1>
    %322 = vector.broadcast %321 : vector<8x1xi1> to vector<8x16xi1>
    %323 = arith.select %322, %320, %317 : vector<8x16xi1>, vector<8x16xf32>
    %324 = vector.extract_strided_slice %323 {offsets = [0, 4], sizes = [8, 12], strides = [1, 1]} : vector<8x16xf32> to vector<8x12xf32>
    %325 = vector.extract_strided_slice %323 {offsets = [0, 0], sizes = [8, 4], strides = [1, 1]} : vector<8x16xf32> to vector<8x4xf32>
    %326 = tpu.concatenate %324, %325 in 1 : vector<8x12xf32>, vector<8x4xf32> -> vector<8x16xf32>
    %327 = vector.shape_cast %75 : vector<8x1xi1> to vector<8x1xi1>
    %328 = vector.broadcast %327 : vector<8x1xi1> to vector<8x16xi1>
    %329 = arith.select %328, %326, %323 : vector<8x16xi1>, vector<8x16xf32>
    %330 = arith.select %81, %82, %329 : vector<8x16xi1>, vector<8x16xf32>
    %331 = arith.select %77, %308, %330 : vector<8x16xi1>, vector<8x16xf32>
    %332 = arith.addf %287, %331 : vector<8x16xf32>
    %333 = arith.addf %332, %28 : vector<8x16xf32>
    %cst_74 = arith.constant dense<0xFF800000> : vector<8xf32>
    %334 = vector.multi_reduction <maximumf>, %333, %cst_74 [1] : vector<8x16xf32> to vector<8xf32>
    %335 = vector.shape_cast %334 : vector<8xf32> to vector<8x1xf32>
    %336 = vector.broadcast %335 : vector<8x1xf32> to vector<8x16xf32>
    %337 = arith.subf %333, %336 : vector<8x16xf32>
    %338 = math.exp %337 : vector<8x16xf32>
    %cst_75 = arith.constant dense<0.000000e+00> : vector<8xf32>
    %339 = vector.multi_reduction <add>, %338, %cst_75 [1] : vector<8x16xf32> to vector<8xf32>
    %340 = vector.shape_cast %339 : vector<8xf32> to vector<8x1xf32>
    %341 = tpu.reciprocal %340 {approx = true} : vector<8x1xf32> -> vector<8x1xf32>
    %342 = vector.broadcast %341 : vector<8x1xf32> to vector<8x16xf32>
    %343 = arith.mulf %338, %342 : vector<8x16xf32>
    %344 = arith.truncf %343 : vector<8x16xf32> to vector<8x16xbf16>
    %345 = vector.extract_strided_slice %12 {offsets = [0, 24], sizes = [16, 8], strides = [1, 1]} : vector<16x32xbf16> to vector<16x8xbf16>
    %cst_76 = arith.constant dense<0.000000e+00> : vector<8x8xf32>
    %346 = tpu.matmul %344, %345, %cst_76 {dimension_numbers = #tpu.dot_dimension_numbers<[1], [0], [0], [1], [0, 0, 1, 1], [], []>} : vector<8x16xbf16>, vector<16x8xbf16>, vector<8x8xf32> -> vector<8x8xf32>
    %347 = arith.truncf %346 : vector<8x8xf32> to vector<8x8xbf16>
    %348 = vector.extract_strided_slice %29 {offsets = [24, 0], sizes = [8, 32], strides = [1, 1]} : vector<32x32xbf16> to vector<8x32xbf16>
    %cst_77 = arith.constant dense<0.000000e+00> : vector<8x32xf32>
    %349 = tpu.matmul %347, %348, %cst_77 {dimension_numbers = #tpu.dot_dimension_numbers<[1], [0], [0], [1], [0, 0, 1, 1], [], []>} : vector<8x8xbf16>, vector<8x32xbf16>, vector<8x32xf32> -> vector<8x32xf32>
    %c0_78 = arith.constant 0 : index
    %c0_79 = arith.constant 0 : index
    %350 = vector.load %arg12[%c0_78, %c0_79] : memref<8x32xf32, #tpu.memory_space<vmem>>, vector<8x32xf32>
    %351 = arith.addf %350, %349 : vector<8x32xf32>
    %c0_80 = arith.constant 0 : index
    %c0_81 = arith.constant 0 : index
    %352 = vector.load %arg12[%c0_80, %c0_81] : memref<8x32xf32, #tpu.memory_space<vmem>>, vector<8x32xf32>
    tpu.vector_store %arg12[%c0_80, %c0_81], %351 {strides = array<i32>} : memref<8x32xf32, #tpu.memory_space<vmem>>, vector<8x32xf32>,
    %c0_82 = arith.constant 0 : index
    %c0_83 = arith.constant 0 : index
    %353 = vector.load %arg12[%c0_82, %c0_83] : memref<8x32xf32, #tpu.memory_space<vmem>>, vector<8x32xf32>
    %c0_84 = arith.constant 0 : index
    %c0_85 = arith.constant 0 : index
    %c0_86 = arith.constant 0 : index
    %354 = vector.load %arg11[%c0_84, %c0_85, %c0_86] : memref<1x8x32xf32, #tpu.memory_space<vmem>>, vector<1x8x32xf32>
    %355 = vector.shape_cast %354 : vector<1x8x32xf32> to vector<8x32xf32>
    %356 = vector.shape_cast %353 : vector<8x32xf32> to vector<1x8x32xf32>
    tpu.vector_store %arg11[%c0_84, %c0_85, %c0_86], %356 {strides = array<i32>} : memref<1x8x32xf32, #tpu.memory_space<vmem>>, vector<1x8x32xf32>,
    return
  }
  func.func @transform_0(%arg0: i32) -> (i32, i32, i32) {
    %c0_i32 = arith.constant 0 : i32
    %c0_i32_0 = arith.constant 0 : i32
    %c0_i32_1 = arith.constant 0 : i32
    return %arg0, %c0_i32, %c0_i32_0 : i32, i32, i32
  }
  func.func @transform_1(%arg0: i32) -> (i32, i32) {
    %c0_i32 = arith.constant 0 : i32
    %c0_i32_0 = arith.constant 0 : i32
    %c0_i32_1 = arith.constant 0 : i32
    return %c0_i32, %c0_i32_0 : i32, i32
  }
  func.func @transform_2(%arg0: i32) -> (i32, i32) {
    %c0_i32 = arith.constant 0 : i32
    %c0_i32_0 = arith.constant 0 : i32
    %c0_i32_1 = arith.constant 0 : i32
    return %c0_i32, %c0_i32_0 : i32, i32
  }
  func.func @transform_3(%arg0: i32) -> (i32, i32) {
    %c0_i32 = arith.constant 0 : i32
    %c0_i32_0 = arith.constant 0 : i32
    %c0_i32_1 = arith.constant 0 : i32
    return %c0_i32, %c0_i32_0 : i32, i32
  }
  func.func @transform_4(%arg0: i32) -> (i32, i32) {
    %c0_i32 = arith.constant 0 : i32
    %c0_i32_0 = arith.constant 0 : i32
    %c0_i32_1 = arith.constant 0 : i32
    return %c0_i32, %c0_i32_0 : i32, i32
  }
  func.func @transform_5(%arg0: i32) -> (i32, i32) {
    %c0_i32 = arith.constant 0 : i32
    %c0_i32_0 = arith.constant 0 : i32
    %c0_i32_1 = arith.constant 0 : i32
    return %c0_i32, %c0_i32_0 : i32, i32
  }
  func.func @transform_6(%arg0: i32) -> (i32, i32) {
    %c0_i32 = arith.constant 0 : i32
    %c0_i32_0 = arith.constant 0 : i32
    %c0_i32_1 = arith.constant 0 : i32
    return %c0_i32, %c0_i32_0 : i32, i32
  }
  func.func @transform_7(%arg0: i32) -> (i32, i32) {
    %c0_i32 = arith.constant 0 : i32
    %c0_i32_0 = arith.constant 0 : i32
    %c0_i32_1 = arith.constant 0 : i32
    return %c0_i32, %c0_i32_0 : i32, i32
  }
  func.func @transform_8(%arg0: i32) -> (i32, i32) {
    %c0_i32 = arith.constant 0 : i32
    %c0_i32_0 = arith.constant 0 : i32
    %c0_i32_1 = arith.constant 0 : i32
    return %c0_i32, %c0_i32_0 : i32, i32
  }
  func.func @transform_9(%arg0: i32) -> (i32, i32) {
    %c0_i32 = arith.constant 0 : i32
    %c0_i32_0 = arith.constant 0 : i32
    %c0_i32_1 = arith.constant 0 : i32
    return %c0_i32, %c0_i32_0 : i32, i32
  }
  func.func @transform_10(%arg0: i32) -> (i32, i32, i32) {
    %c0_i32 = arith.constant 0 : i32
    %c0_i32_0 = arith.constant 0 : i32
    %c0_i32_1 = arith.constant 0 : i32
    return %arg0, %c0_i32, %c0_i32_0 : i32, i32, i32
  }
}

</mosaic_0001>

<llo_original>
// kernel: tpu_custom_call.1
$region0: #{tpu_custom_call.1}
  #allocation0 [shape = 'u32[]', space=smem, size = 0x4, offset = 0x4, fixed_abs, tag = 'smem constant byte address 0x4 - core index']
  #allocation1 [shape = 'u32[144,128]{1,0:T(1,128)}', space=vmem, size = 0x12000, scoped, tag = 'internal scratch']
  #allocation2 [shape = 'f32[8,32]{1,0:T(8,128)}', space=vmem, size = 0x1000, scoped, tag = 'scratch operand']
  %s0 = inlined_call_operand.hbm [shape: bf16[2,16,32], index: 0, kind: input, shape index: {}]
  %s1 = inlined_call_operand.hbm [shape: bf16[16,32], index: 1, kind: input, shape index: {}]
  %s2 = inlined_call_operand.hbm [shape: bf16[32,32], index: 2, kind: input, shape index: {}]
  %s3 = inlined_call_operand.hbm [shape: bf16[32,32], index: 3, kind: input, shape index: {}]
  %s4 = inlined_call_operand.hbm [shape: bf16[32,32], index: 4, kind: input, shape index: {}]
  %s5 = inlined_call_operand.vmem [shape: bf16[32,32], index: 5, kind: input, shape index: {}]
  %s6 = inlined_call_operand.hbm [shape: bf16[32,32], index: 6, kind: input, shape index: {}]
  %s7 = inlined_call_operand.vmem [shape: f32[1,32], index: 7, kind: input, shape index: {}]
  %s8 = inlined_call_operand.vmem [shape: f32[1,32], index: 8, kind: input, shape index: {}]
  %s9 = inlined_call_operand.vmem [shape: f32[8,16], index: 9, kind: input, shape index: {}]
  %s10 = inlined_call_operand.hbm [shape: f32[2,8,32], index: 10, kind: output, shape index: {}]
  %s11 = sld [smem:[#allocation0]]
  $region97: #{tpu_custom_call.1} parent=0
    _
  %s13 = ssub.s32 1, %s11
  %s14 = scalar_select 0, %s13, %s11
  $region1: #{tpu_custom_call.1} parent=0
    #allocation3 [shape = 'u8[8192]{0}', space=vmem, size = 0x2000, scoped, tag = 'input window, operand 0']
    #allocation4 [shape = 's32[2]{0}', space=sflag, size = 0x8, scoped, tag = 'scoped memory for tpu_custom_call.1']
    #allocation5 [shape = 's32[2]{0}', space=sflag, size = 0x8, scoped, tag = 'scoped memory for tpu_custom_call.1']
    #allocation6 [shape = 'u8[4096]{0}', space=vmem, size = 0x1000, scoped, tag = 'input window, operand 1, single buffered']
    #allocation7 [shape = 's32[1]{0}', space=sflag, size = 0x4, scoped, tag = 'scoped memory for tpu_custom_call.1']
    #allocation8 [shape = 'u8[8192]{0}', space=vmem, size = 0x2000, scoped, tag = 'input window, operand 2, single buffered']
    #allocation9 [shape = 'u8[8192]{0}', space=vmem, size = 0x2000, scoped, tag = 'input window, operand 3, single buffered']
    #allocation10 [shape = 's32[1]{0}', space=sflag, size = 0x4, scoped, tag = 'scoped memory for tpu_custom_call.1']
    #allocation11 [shape = 'u8[8192]{0}', space=vmem, size = 0x2000, scoped, tag = 'input window, operand 4, single buffered']
    #allocation12 [shape = 'u8[8192]{0}', space=vmem, size = 0x2000, scoped, tag = 'input window, operand 6, single buffered']
    #allocation13 [shape = 's32[1]{0}', space=sflag, size = 0x4, scoped, tag = 'scoped memory for tpu_custom_call.1']
    #allocation14 [shape = 'u8[8192]{0}', space=vmem, size = 0x2000, scoped, tag = 'output window, operand 0']
    %15 = vsyncpa [#allocation4], 0
    %s16 = scalar_lea.sflag [#allocation4], 1
    %17 = vsyncpa %s16, 0
    %18 = vsyncpa [#allocation7], 0
    %19 = vsyncpa [#allocation10], 0
    %20 = vsyncpa [#allocation13], 0
    %21 = vsyncpa [#allocation5], 0
    %s22 = scalar_lea.sflag [#allocation5], 1
    %23 = vsyncpa %s22, 0
    loop: start=0, step=1, limit=4
    $region2: #{tpu_custom_call.1} parent=1 // loop_pre_header
      _
    $region3: #{tpu_custom_call.1} parent=1 // loop_header
      %s25 = sphi 0, %s29
      %p26 = scmp.ge.s32.totalorder %s25, 4
      %s35 = sphi 0, %s37
      %s38 = sphi 0, %s35
      %s39 = sphi 0, %s38
      %s55 = sphi 0, %s39
      %s59 = sphi 0, %s59
      %s61 = sphi 0, %s59
      %s62 = sphi 0, %s61
      %s76 = sphi 0, %s62
      %s80 = sphi 0, %s80
      %s82 = sphi 0, %s80
      %s83 = sphi 0, %s82
      %s97 = sphi 0, %s83
      %s101 = sphi 0, %s101
      %s103 = sphi 0, %s101
      %s104 = sphi 0, %s103
      %s118 = sphi 0, %s104
      %s122 = sphi 0, %s122
      %s124 = sphi 0, %s122
      %s125 = sphi 0, %s124
      %s139 = sphi 0, %s125
      %s143 = sphi 0, %s143
      %s145 = sphi 0, %s143
      %s146 = sphi 0, %s145
      %s160 = sphi 0, %s146
      %s164 = sphi 0, %s164
      %s166 = sphi 0, %s164
      %s167 = sphi 0, %s166
      %s181 = sphi 0, %s167
      %s185 = sphi 0, %s185
      %s187 = sphi 0, %s185
      %s188 = sphi 0, %s187
      %s202 = sphi 0, %s188
      %s206 = sphi 0, %s206
      %s208 = sphi 0, %s206
      %s209 = sphi 0, %s208
      %s223 = sphi 0, %s209
      %s227 = sphi 0, %s227
      %s229 = sphi 0, %s227
      %s230 = sphi 0, %s229
      %s244 = sphi 0, %s230
      %s250 = sphi 0, %s252
      %s253 = sphi 0, %s250
      %s254 = sphi 0, %s253
      %s270 = sphi 0, %s254
    $region4: #{tpu_custom_call.1} parent=1 // loop_header_branch
      %28 = sbr.rel (%p26) target = $region8
    $region5: #{tpu_custom_call.1} parent=1 // loop_body
      %s30 = ssub.s32 %s25, 1
      %s31 = ssub.s32 %s25, 2
      %s32 = sadd.s32 %s25, 1
      %s33 = ssub.s32 %s25, %s32
      %p34 = scmp.eq.s32.totalorder %s33, 0
      %s36 = sadd.s32 %s35, 1
      %s37 = scalar_select %p34, %s35, %s36
      %p40 = pneg %p34
      %p41 = scmp.eq.s32.totalorder %s25, 1
      %p42 = por %p40, %p41
      %p43 = scmp.ne.s32.totalorder %s35, %s38
      %p44 = scmp.eq.s32.totalorder %s25, 0
      %p45 = por %p43, %p44
      %p46 = scmp.ne.s32.totalorder %s35, %s38
      %p47 = scmp.eq.s32.totalorder %s30, 1
      %p48 = por %p46, %p47
      %p49 = scmp.ne.s32.totalorder %s38, %s39
      %p50 = scmp.eq.s32.totalorder %s30, 0
      %p51 = por %p49, %p50
      %p52 = scmp.ne.s32.totalorder %s38, %s39
      %p53 = scmp.eq.s32.totalorder %s31, 1
      %p54 = por %p52, %p53
      %p56 = scmp.ne.s32.totalorder %s39, %s55
      %p57 = scmp.eq.s32.totalorder %s31, 0
      %p58 = por %p56, %p57
      %s60 = sadd.s32 %s59, 1
      %p63 = scmp.eq.s32.totalorder %s25, 1
      %p64 = scmp.ne.s32.totalorder %s59, %s61
      %p65 = scmp.eq.s32.totalorder %s25, 0
      %p66 = por %p64, %p65
      %p67 = scmp.ne.s32.totalorder %s59, %s61
      %p68 = scmp.eq.s32.totalorder %s30, 1
      %p69 = por %p67, %p68
      %p70 = scmp.ne.s32.totalorder %s61, %s62
      %p71 = scmp.eq.s32.totalorder %s30, 0
      %p72 = por %p70, %p71
      %p73 = scmp.ne.s32.totalorder %s61, %s62
      %p74 = scmp.eq.s32.totalorder %s31, 1
      %p75 = por %p73, %p74
      %p77 = scmp.ne.s32.totalorder %s62, %s76
      %p78 = scmp.eq.s32.totalorder %s31, 0
      %p79 = por %p77, %p78
      %s81 = sadd.s32 %s80, 1
      %p84 = scmp.eq.s32.totalorder %s25, 1
      %p85 = scmp.ne.s32.totalorder %s80, %s82
      %p86 = scmp.eq.s32.totalorder %s25, 0
      %p87 = por %p85, %p86
      %p88 = scmp.ne.s32.totalorder %s80, %s82
      %p89 = scmp.eq.s32.totalorder %s30, 1
      %p90 = por %p88, %p89
      %p91 = scmp.ne.s32.totalorder %s82, %s83
      %p92 = scmp.eq.s32.totalorder %s30, 0
      %p93 = por %p91, %p92
      %p94 = scmp.ne.s32.totalorder %s82, %s83
      %p95 = scmp.eq.s32.totalorder %s31, 1
      %p96 = por %p94, %p95
      %p98 = scmp.ne.s32.totalorder %s83, %s97
      %p99 = scmp.eq.s32.totalorder %s31, 0
      %p100 = por %p98, %p99
      %s102 = sadd.s32 %s101, 1
      %p105 = scmp.eq.s32.totalorder %s25, 1
      %p106 = scmp.ne.s32.totalorder %s101, %s103
      %p107 = scmp.eq.s32.totalorder %s25, 0
      %p108 = por %p106, %p107
      %p109 = scmp.ne.s32.totalorder %s101, %s103
      %p110 = scmp.eq.s32.totalorder %s30, 1
      %p111 = por %p109, %p110
      %p112 = scmp.ne.s32.totalorder %s103, %s104
      %p113 = scmp.eq.s32.totalorder %s30, 0
      %p114 = por %p112, %p113
      %p115 = scmp.ne.s32.totalorder %s103, %s104
      %p116 = scmp.eq.s32.totalorder %s31, 1
      %p117 = por %p115, %p116
      %p119 = scmp.ne.s32.totalorder %s104, %s118
      %p120 = scmp.eq.s32.totalorder %s31, 0
      %p121 = por %p119, %p120
      %s123 = sadd.s32 %s122, 1
      %p126 = scmp.eq.s32.totalorder %s25, 1
      %p127 = scmp.ne.s32.totalorder %s122, %s124
      %p128 = scmp.eq.s32.totalorder %s25, 0
      %p129 = por %p127, %p128
      %p130 = scmp.ne.s32.totalorder %s122, %s124
      %p131 = scmp.eq.s32.totalorder %s30, 1
      %p132 = por %p130, %p131
      %p133 = scmp.ne.s32.totalorder %s124, %s125
      %p134 = scmp.eq.s32.totalorder %s30, 0
      %p135 = por %p133, %p134
      %p136 = scmp.ne.s32.totalorder %s124, %s125
      %p137 = scmp.eq.s32.totalorder %s31, 1
      %p138 = por %p136, %p137
      %p140 = scmp.ne.s32.totalorder %s125, %s139
      %p141 = scmp.eq.s32.totalorder %s31, 0
      %p142 = por %p140, %p141
      %s144 = sadd.s32 %s143, 1
      %p147 = scmp.eq.s32.totalorder %s25, 1
      %p148 = scmp.ne.s32.totalorder %s143, %s145
      %p149 = scmp.eq.s32.totalorder %s25, 0
      %p150 = por %p148, %p149
      %p151 = scmp.ne.s32.totalorder %s143, %s145
      %p152 = scmp.eq.s32.totalorder %s30, 1
      %p153 = por %p151, %p152
      %p154 = scmp.ne.s32.totalorder %s145, %s146
      %p155 = scmp.eq.s32.totalorder %s30, 0
      %p156 = por %p154, %p155
      %p157 = scmp.ne.s32.totalorder %s145, %s146
      %p158 = scmp.eq.s32.totalorder %s31, 1
      %p159 = por %p157, %p158
      %p161 = scmp.ne.s32.totalorder %s146, %s160
      %p162 = scmp.eq.s32.totalorder %s31, 0
      %p163 = por %p161, %p162
      %s165 = sadd.s32 %s164, 1
      %p168 = scmp.eq.s32.totalorder %s25, 1
      %p169 = scmp.ne.s32.totalorder %s164, %s166
      %p170 = scmp.eq.s32.totalorder %s25, 0
      %p171 = por %p169, %p170
      %p172 = scmp.ne.s32.totalorder %s164, %s166
      %p173 = scmp.eq.s32.totalorder %s30, 1
      %p174 = por %p172, %p173
      %p175 = scmp.ne.s32.totalorder %s166, %s167
      %p176 = scmp.eq.s32.totalorder %s30, 0
      %p177 = por %p175, %p176
      %p178 = scmp.ne.s32.totalorder %s166, %s167
      %p179 = scmp.eq.s32.totalorder %s31, 1
      %p180 = por %p178, %p179
      %p182 = scmp.ne.s32.totalorder %s167, %s181
      %p183 = scmp.eq.s32.totalorder %s31, 0
      %p184 = por %p182, %p183
      %s186 = sadd.s32 %s185, 1
      %p189 = scmp.eq.s32.totalorder %s25, 1
      %p190 = scmp.ne.s32.totalorder %s185, %s187
      %p191 = scmp.eq.s32.totalorder %s25, 0
      %p192 = por %p190, %p191
      %p193 = scmp.ne.s32.totalorder %s185, %s187
      %p194 = scmp.eq.s32.totalorder %s30, 1
      %p195 = por %p193, %p194
      %p196 = scmp.ne.s32.totalorder %s187, %s188
      %p197 = scmp.eq.s32.totalorder %s30, 0
      %p198 = por %p196, %p197
      %p199 = scmp.ne.s32.totalorder %s187, %s188
      %p200 = scmp.eq.s32.totalorder %s31, 1
      %p201 = por %p199, %p200
      %p203 = scmp.ne.s32.totalorder %s188, %s202
      %p204 = scmp.eq.s32.totalorder %s31, 0
      %p205 = por %p203, %p204
      %s207 = sadd.s32 %s206, 1
      %p210 = scmp.eq.s32.totalorder %s25, 1
      %p211 = scmp.ne.s32.totalorder %s206, %s208
      %p212 = scmp.eq.s32.totalorder %s25, 0
      %p213 = por %p211, %p212
      %p214 = scmp.ne.s32.totalorder %s206, %s208
      %p215 = scmp.eq.s32.totalorder %s30, 1
      %p216 = por %p214, %p215
      %p217 = scmp.ne.s32.totalorder %s208, %s209
      %p218 = scmp.eq.s32.totalorder %s30, 0
      %p219 = por %p217, %p218
      %p220 = scmp.ne.s32.totalorder %s208, %s209
      %p221 = scmp.eq.s32.totalorder %s31, 1
      %p222 = por %p220, %p221
      %p224 = scmp.ne.s32.totalorder %s209, %s223
      %p225 = scmp.eq.s32.totalorder %s31, 0
      %p226 = por %p224, %p225
      %s228 = sadd.s32 %s227, 1
      %p231 = scmp.eq.s32.totalorder %s25, 1
      %p232 = scmp.ne.s32.totalorder %s227, %s229
      %p233 = scmp.eq.s32.totalorder %s25, 0
      %p234 = por %p232, %p233
      %p235 = scmp.ne.s32.totalorder %s227, %s229
      %p236 = scmp.eq.s32.totalorder %s30, 1
      %p237 = por %p235, %p236
      %p238 = scmp.ne.s32.totalorder %s229, %s230
      %p239 = scmp.eq.s32.totalorder %s30, 0
      %p240 = por %p238, %p239
      %p241 = scmp.ne.s32.totalorder %s229, %s230
      %p242 = scmp.eq.s32.totalorder %s31, 1
      %p243 = por %p241, %p242
      %p245 = scmp.ne.s32.totalorder %s230, %s244
      %p246 = scmp.eq.s32.totalorder %s31, 0
      %p247 = por %p245, %p246
      %s248 = ssub.s32 %s25, %s32
      %p249 = scmp.eq.s32.totalorder %s248, 0
      %s251 = sadd.s32 %s250, 1
      %s252 = scalar_select %p249, %s250, %s251
      %p255 = pneg %p249
      %p256 = scmp.eq.s32.totalorder %s25, 1
      %p257 = por %p255, %p256
      %p258 = scmp.ne.s32.totalorder %s250, %s253
      %p259 = scmp.eq.s32.totalorder %s25, 0
      %p260 = por %p258, %p259
      %p261 = scmp.ne.s32.totalorder %s250, %s253
      %p262 = scmp.eq.s32.totalorder %s30, 1
      %p263 = por %p261, %p262
      %p264 = scmp.ne.s32.totalorder %s253, %s254
      %p265 = scmp.eq.s32.totalorder %s30, 0
      %p266 = por %p264, %p265
      %p267 = scmp.ne.s32.totalorder %s253, %s254
      %p268 = scmp.eq.s32.totalorder %s31, 1
      %p269 = por %p267, %p268
      %p271 = scmp.ne.s32.totalorder %s254, %s270
      %p272 = scmp.eq.s32.totalorder %s31, 0
      %p273 = por %p271, %p272
      %p274 = scmp.le.s32.totalorder 1, %s25
      %p275 = scmp.lt.s32.totalorder %s25, 3
      %p276 = pnand %p274, %p275
      %p277 = pneg %p276
      // Predicated region
      $region9: #{tpu_custom_call.1} parent=5 // pred_check
        _
      $region10: #{tpu_custom_call.1} parent=5 // pred_check_branch
        %279 = sbr.rel (%p276) target = $region12
      $region11: #{tpu_custom_call.1} parent=5 // pred_region
        %s280 = ssub.s32 %s25, 1
        // Predicated region
        $region13: #{tpu_custom_call.1} parent=11 // pred_check
          %p281 = pneg %p72
        $region14: #{tpu_custom_call.1} parent=11 // pred_check_branch
          %283 = sbr.rel (%p281) target = $region16
        $region15: #{tpu_custom_call.1} parent=11 // pred_region
          %s285 = ssub.s32 128, 128
          %286 = vsyncadd [#allocation7], %s285
          %s287 = sshll.u32 [#allocation6], 4
          %s288 = int_to_ptr.vmem [resolvable:$true] %s287
          %293 = dma.hbm_to_vmem [thread:$0]  %s1, 128, %s288, [#allocation7], 64, 64, 4
        $region16: #{tpu_custom_call.1} parent=11 // pred_fallthru
          _
        // Predicated region
        $region17: #{tpu_custom_call.1} parent=11 // pred_check
          %p294 = pneg %p93
        $region18: #{tpu_custom_call.1} parent=11 // pred_check_branch
          %296 = sbr.rel (%p294) target = $region20
        $region19: #{tpu_custom_call.1} parent=11 // pred_region
          %s298 = ssub.s32 256, 256
          %299 = vsyncadd [#allocation7], %s298
          %s300 = sshll.u32 [#allocation8], 4
          %s301 = int_to_ptr.vmem [resolvable:$true] %s300
          %306 = dma.hbm_to_vmem [thread:$0]  %s2, 256, %s301, [#allocation7], 64, 64, 4
        $region20: #{tpu_custom_call.1} parent=11 // pred_fallthru
          _
        // Predicated region
        $region21: #{tpu_custom_call.1} parent=11 // pred_check
          %p307 = pneg %p114
        $region22: #{tpu_custom_call.1} parent=11 // pred_check_branch
          %309 = sbr.rel (%p307) target = $region24
        $region23: #{tpu_custom_call.1} parent=11 // pred_region
          %s311 = ssub.s32 256, 256
          %312 = vsyncadd [#allocation10], %s311
          %s313 = sshll.u32 [#allocation9], 4
          %s314 = int_to_ptr.vmem [resolvable:$true] %s313
          %319 = dma.hbm_to_vmem [thread:$0]  %s3, 256, %s314, [#allocation10], 64, 64, 4
        $region24: #{tpu_custom_call.1} parent=11 // pred_fallthru
          _
        // Predicated region
        $region25: #{tpu_custom_call.1} parent=11 // pred_check
          %p320 = pneg %p135
        $region26: #{tpu_custom_call.1} parent=11 // pred_check_branch
          %322 = sbr.rel (%p320) target = $region28
        $region27: #{tpu_custom_call.1} parent=11 // pred_region
          %s324 = ssub.s32 256, 256
          %325 = vsyncadd [#allocation10], %s324
          %s326 = sshll.u32 [#allocation11], 4
          %s327 = int_to_ptr.vmem [resolvable:$true] %s326
          %332 = dma.hbm_to_vmem [thread:$0]  %s4, 256, %s327, [#allocation10], 64, 64, 4
        $region28: #{tpu_custom_call.1} parent=11 // pred_fallthru
          _
        // Predicated region
        $region29: #{tpu_custom_call.1} parent=11 // pred_check
          %p333 = pneg %p156
        $region30: #{tpu_custom_call.1} parent=11 // pred_check_branch
          %335 = sbr.rel (%p333) target = $region32
        $region31: #{tpu_custom_call.1} parent=11 // pred_region
          _
        $region32: #{tpu_custom_call.1} parent=11 // pred_fallthru
          _
        // Predicated region
        $region33: #{tpu_custom_call.1} parent=11 // pred_check
          %p336 = pneg %p177
        $region34: #{tpu_custom_call.1} parent=11 // pred_check_branch
          %338 = sbr.rel (%p336) target = $region36
        $region35: #{tpu_custom_call.1} parent=11 // pred_region
          %s340 = ssub.s32 256, 256
          %341 = vsyncadd [#allocation13], %s340
          %s342 = sshll.u32 [#allocation12], 4
          %s343 = int_to_ptr.vmem [resolvable:$true] %s342
          %348 = dma.hbm_to_vmem [thread:$0]  %s6, 256, %s343, [#allocation13], 64, 64, 4
        $region36: #{tpu_custom_call.1} parent=11 // pred_fallthru
          _
        // Predicated region
        $region37: #{tpu_custom_call.1} parent=11 // pred_check
          %p349 = pneg %p198
        $region38: #{tpu_custom_call.1} parent=11 // pred_check_branch
          %351 = sbr.rel (%p349) target = $region40
        $region39: #{tpu_custom_call.1} parent=11 // pred_region
          _
        $region40: #{tpu_custom_call.1} parent=11 // pred_fallthru
          _
        // Predicated region
        $region41: #{tpu_custom_call.1} parent=11 // pred_check
          %p352 = pneg %p219
        $region42: #{tpu_custom_call.1} parent=11 // pred_check_branch
          %354 = sbr.rel (%p352) target = $region44
        $region43: #{tpu_custom_call.1} parent=11 // pred_region
          _
        $region44: #{tpu_custom_call.1} parent=11 // pred_fallthru
          _
        // Predicated region
        $region45: #{tpu_custom_call.1} parent=11 // pred_check
          %p355 = pneg %p240
        $region46: #{tpu_custom_call.1} parent=11 // pred_check_branch
          %357 = sbr.rel (%p355) target = $region48
        $region47: #{tpu_custom_call.1} parent=11 // pred_region
          _
        $region48: #{tpu_custom_call.1} parent=11 // pred_fallthru
          _
      $region12: #{tpu_custom_call.1} parent=5 // pred_fallthru
        _
      %p358 = scmp.lt.s32.totalorder %s25, 2
      // Predicated region
      $region49: #{tpu_custom_call.1} parent=5 // pred_check
        %p359 = pneg %p358
      $region50: #{tpu_custom_call.1} parent=5 // pred_check_branch
        %361 = sbr.rel (%p359) target = $region52
      $region51: #{tpu_custom_call.1} parent=5 // pred_region
        // Predicated region
        $region53: #{tpu_custom_call.1} parent=51 // pred_check
          %p362 = pneg %p45
        $region54: #{tpu_custom_call.1} parent=51 // pred_check_branch
          %364 = sbr.rel (%p362) target = $region56
        $region55: #{tpu_custom_call.1} parent=51 // pred_region
          %s365 = sand.u32 %s35, 1
          %s366 = scalar_lea.sflag [#allocation4], %s365
          %s367 = sand.u32 %s35, 1
          %s368 = smul.addr %s367, 8
          %s369 = scalar_lea.vmem [#allocation3], %s368
          %s371 = ssub.s32 128, 128
          %372 = vsyncadd %s366, %s371
          %s373 = smul.addr %s25, 2
          %s374 = smul.addr %s373, 64
          %s375 = scalar_lea.hbm %s0, %s374
          %s376 = sshll.u32 %s369, 4
          %s377 = int_to_ptr.vmem [resolvable:$true] %s376
          %382 = dma.hbm_to_vmem [thread:$0]  %s375, 128, %s377, %s366, 64, 64, 4
        $region56: #{tpu_custom_call.1} parent=51 // pred_fallthru
          _
      $region52: #{tpu_custom_call.1} parent=5 // pred_fallthru
        _
      %p383 = scmp.le.s32.totalorder 1, %s25
      %p384 = scmp.lt.s32.totalorder %s25, 3
      %p385 = pnand %p383, %p384
      %p386 = pneg %p385
      // Predicated region
      $region57: #{tpu_custom_call.1} parent=5 // pred_check
        _
      $region58: #{tpu_custom_call.1} parent=5 // pred_check_branch
        %388 = sbr.rel (%p385) target = $region60
      $region59: #{tpu_custom_call.1} parent=5 // pred_region
        %s389 = ssub.s32 %s25, 1
        %s390 = sand.u32 %s38, 1
        %s391 = scalar_lea.sflag [#allocation4], %s390
        %s392 = sand.u32 %s38, 1
        %s393 = smul.addr %s392, 8
        %s394 = scalar_lea.vmem [#allocation3], %s393
        // Predicated region
        $region61: #{tpu_custom_call.1} parent=59 // pred_check
          %p395 = pneg %p51
        $region62: #{tpu_custom_call.1} parent=59 // pred_check_branch
          %397 = sbr.rel (%p395) target = $region64
        $region63: #{tpu_custom_call.1} parent=59 // pred_region
          %398 = dma.done %s391, 128
        $region64: #{tpu_custom_call.1} parent=59 // pred_fallthru
          _
        // Predicated region
        $region65: #{tpu_custom_call.1} parent=59 // pred_check
          %p399 = pneg %p72
        $region66: #{tpu_custom_call.1} parent=59 // pred_check_branch
          %401 = sbr.rel (%p399) target = $region68
        $region67: #{tpu_custom_call.1} parent=59 // pred_region
          %402 = dma.done [#allocation7], 128
        $region68: #{tpu_custom_call.1} parent=59 // pred_fallthru
          _
        // Predicated region
        $region69: #{tpu_custom_call.1} parent=59 // pred_check
          %p403 = pneg %p93
        $region70: #{tpu_custom_call.1} parent=59 // pred_check_branch
          %405 = sbr.rel (%p403) target = $region72
        $region71: #{tpu_custom_call.1} parent=59 // pred_region
          %406 = dma.done [#allocation7], 256
        $region72: #{tpu_custom_call.1} parent=59 // pred_fallthru
          _
        // Predicated region
        $region73: #{tpu_custom_call.1} parent=59 // pred_check
          %p407 = pneg %p114
        $region74: #{tpu_custom_call.1} parent=59 // pred_check_branch
          %409 = sbr.rel (%p407) target = $region76
        $region75: #{tpu_custom_call.1} parent=59 // pred_region
          %410 = dma.done [#allocation10], 256
        $region76: #{tpu_custom_call.1} parent=59 // pred_fallthru
          _
        // Predicated region
        $region77: #{tpu_custom_call.1} parent=59 // pred_check
          %p411 = pneg %p135
        $region78: #{tpu_custom_call.1} parent=59 // pred_check_branch
          %413 = sbr.rel (%p411) target = $region80
        $region79: #{tpu_custom_call.1} parent=59 // pred_region
          %414 = dma.done [#allocation10], 256
        $region80: #{tpu_custom_call.1} parent=59 // pred_fallthru
          _
        // Predicated region
        $region81: #{tpu_custom_call.1} parent=59 // pred_check
          %p415 = pneg %p177
        $region82: #{tpu_custom_call.1} parent=59 // pred_check_branch
          %417 = sbr.rel (%p415) target = $region84
        $region83: #{tpu_custom_call.1} parent=59 // pred_region
          %418 = dma.done [#allocation13], 256
        $region84: #{tpu_custom_call.1} parent=59 // pred_fallthru
          _
        %s419 = sand.u32 %s38, 1
        %s420 = scalar_lea.sflag [#allocation4], %s419
        %s421 = sand.u32 %s38, 1
        %s422 = smul.addr %s421, 8
        %s423 = scalar_lea.vmem [#allocation3], %s422
        %p424 = pneg %p51
        %p425 = pneg %p48
        %p426 = pneg %p72
        %p427 = pneg %p69
        %p428 = pneg %p93
        %p429 = pneg %p90
        %p430 = pneg %p114
        %p431 = pneg %p111
        %p432 = pneg %p135
        %p433 = pneg %p132
        %p434 = pneg %p156
        %p435 = pneg %p153
        %p436 = pneg %p177
        %p437 = pneg %p174
        %p438 = pneg %p198
        %p439 = pneg %p195
        %p440 = pneg %p219
        %p441 = pneg %p216
        %p442 = pneg %p240
        %p443 = pneg %p237
        %p444 = pneg %p266
        %p445 = pneg %p263
        %s446 = sand.u32 %s253, 1
        %s447 = scalar_lea.sflag [#allocation5], %s446
        %s448 = sand.u32 %s253, 1
        %s449 = smul.addr %s448, 8
        %s450 = scalar_lea.vmem [#allocation14], %s449
        %v452 = vld [vmem:[%s394] sm:$0xf]
        %v453 = vld [vmem:[%s394 + $0x4] sm:$0xf]
        %v454 = vld [vmem:[#allocation6] sm:$0xf]
        %v455 = vld [vmem:[#allocation6 + $0x4] sm:$0xf]
        %v456 = vld [vmem:[#allocation8] sm:$0xf]
        %v457 = vld [vmem:[#allocation8 + $0x4] sm:$0xf]
        %v458 = vld [vmem:[#allocation8 + $0x8] sm:$0xf]
        %v459 = vld [vmem:[#allocation8 + $0xc] sm:$0xf]
        %v464 = vunpack.c.l.b16 %v456
        %v465 = vunpack.c.l.b16 %v457
        %v466 = vunpack.c.l.b16 %v458
        %v467 = vunpack.c.l.b16 %v459
        %v468 = vpack.c.b16 %v465, %v464
        %v469 = vpack.c.b16 %v467, %v466
        %vm472 = vcmask 261120
        %v474 = vsel %vm472, %v453, 0
        %476 = vmatprep.subr.bf16.mxu0 0
        %477 = vmatpush1.bf16.msra.mxu0 %v468
        %478 = vmatprep.subr.bf16.mxu0 0
        %479 = vmatpush1.bf16.msra.mxu0 %v469
        %480 = vmatprep.subr.bf16.mxu0 0
        %481 = vmatpush1.bf16.msra.mxu0 0
        %482 = vmatprep.subr.bf16.mxu0 0
        %483 = vmatpush1.bf16.msra.mxu0 0
        %484 = vmatprep.subr.bf16.mxu0 0
        %485 = vmatpush1.bf16.msra.mxu0 0
        %486 = vmatprep.subr.bf16.mxu0 0
        %487 = vmatpush1.bf16.msra.mxu0 0
        %488 = vmatprep.subr.bf16.mxu0 0
        %489 = vmatpush1.bf16.msra.mxu0 0
        %490 = vmatprep.subr.bf16.mxu0 0
        %491 = vmatpush1.bf16.msra.mxu0 0
        %492 = vmatprep.subr.bf16.mxu0 0
        %493 = vmatpush1.bf16.msra.mxu0 0
        %494 = vmatprep.subr.bf16.mxu0 0
        %495 = vmatpush1.bf16.msra.mxu0 0
        %496 = vmatprep.subr.bf16.mxu0 0
        %497 = vmatpush1.bf16.msra.mxu0 0
        %498 = vmatprep.subr.bf16.mxu0 0
        %499 = vmatpush1.bf16.msra.mxu0 0
        %500 = vmatprep.subr.bf16.mxu0 0
        %501 = vmatpush1.bf16.msra.mxu0 0
        %502 = vmatprep.subr.bf16.mxu0 0
        %503 = vmatpush1.bf16.msra.mxu0 0
        %504 = vmatprep.subr.bf16.mxu0 0
        %505 = vmatpush1.bf16.msra.mxu0 0
        %506 = vmatprep.subr.bf16.mxu0 0
        %507 = vmatpush1.bf16.msra.mxu0 0
        %508 = vmatprep.mubr.bf16.mxu0 0
        %509 = vmatmul.mubr.bf16.gmra.mrb[0].mxu0 %v474
        %v510 = vpop.f32.mrb[0].mxu0
        %v511 = vadd.f32 0.0, %v510
        %v512 = vpop.f32.mrb[0].mxu0
        %v513 = vpop.f32.mrb[0].mxu0
        %v514 = vpop.f32.mrb[0].mxu0
        %515 = vdwg.mxu0
        %v516 = vld [vmem:[#allocation9] sm:$0xf]
        %v517 = vld [vmem:[#allocation9 + $0x4] sm:$0xf]
        %v518 = vld [vmem:[#allocation9 + $0x8] sm:$0xf]
        %v519 = vld [vmem:[#allocation9 + $0xc] sm:$0xf]
        %v522 = vunpack.c.l.b16 %v452
        %v523 = vunpack.c.l.b16 %v453
        %v524 = vpack.c.b16 %v523, %v522
        %v529 = vunpack.c.l.b16 %v516
        %v530 = vunpack.c.l.b16 %v517
        %v531 = vunpack.c.l.b16 %v518
        %v532 = vunpack.c.l.b16 %v519
        %v533 = vpack.c.b16 %v530, %v529
        %v534 = vpack.c.b16 %v532, %v531
        %v538 = vsel %vm472, %v524, 0
        %540 = vmatprep.subr.bf16.mxu0 0
        %541 = vmatpush1.bf16.msra.mxu0 %v533
        %542 = vmatprep.subr.bf16.mxu0 0
        %543 = vmatpush1.bf16.msra.mxu0 %v534
        %544 = vmatprep.subr.bf16.mxu0 0
        %545 = vmatpush1.bf16.msra.mxu0 0
        %546 = vmatprep.subr.bf16.mxu0 0
        %547 = vmatpush1.bf16.msra.mxu0 0
        %548 = vmatprep.subr.bf16.mxu0 0
        %549 = vmatpush1.bf16.msra.mxu0 0
        %550 = vmatprep.subr.bf16.mxu0 0
        %551 = vmatpush1.bf16.msra.mxu0 0
        %552 = vmatprep.subr.bf16.mxu0 0
        %553 = vmatpush1.bf16.msra.mxu0 0
        %554 = vmatprep.subr.bf16.mxu0 0
        %555 = vmatpush1.bf16.msra.mxu0 0
        %556 = vmatprep.subr.bf16.mxu0 0
        %557 = vmatpush1.bf16.msra.mxu0 0
        %558 = vmatprep.subr.bf16.mxu0 0
        %559 = vmatpush1.bf16.msra.mxu0 0
        %560 = vmatprep.subr.bf16.mxu0 0
        %561 = vmatpush1.bf16.msra.mxu0 0
        %562 = vmatprep.subr.bf16.mxu0 0
        %563 = vmatpush1.bf16.msra.mxu0 0
        %564 = vmatprep.subr.bf16.mxu0 0
        %565 = vmatpush1.bf16.msra.mxu0 0
        %566 = vmatprep.subr.bf16.mxu0 0
        %567 = vmatpush1.bf16.msra.mxu0 0
        %568 = vmatprep.subr.bf16.mxu0 0
        %569 = vmatpush1.bf16.msra.mxu0 0
        %570 = vmatprep.subr.bf16.mxu0 0
        %571 = vmatpush1.bf16.msra.mxu0 0
        %572 = vmatprep.mubr.bf16.mxu0 0
        %573 = vmatmul.mubr.bf16.gmra.mrb[0].mxu0 %v538
        %v574 = vpop.f32.mrb[0].mxu0
        %v575 = vadd.f32 0.0, %v574
        %v576 = vpop.f32.mrb[0].mxu0
        %v577 = vpop.f32.mrb[0].mxu0
        %v578 = vadd.f32 0.0, %v577
        %v579 = vpop.f32.mrb[0].mxu0
        %580 = vdwg.mxu0
        %v581 = vpack.c.bf16 %v578, %v575
        %v582 = vld [vmem:[#allocation11] sm:$0xf]
        %v583 = vld [vmem:[#allocation11 + $0x4] sm:$0xf]
        %v584 = vld [vmem:[#allocation11 + $0x8] sm:$0xf]
        %v585 = vld [vmem:[#allocation11 + $0xc] sm:$0xf]
        %v590 = vunpack.c.l.b16 %v582
        %v591 = vunpack.c.l.b16 %v583
        %v592 = vunpack.c.l.b16 %v584
        %v593 = vunpack.c.l.b16 %v585
        %v594 = vpack.c.b16 %v591, %v590
        %v595 = vpack.c.b16 %v593, %v592
        %598 = vmatprep.subr.bf16.mxu0 0
        %599 = vmatpush1.bf16.msra.mxu0 %v594
        %600 = vmatprep.subr.bf16.mxu0 0
        %601 = vmatpush1.bf16.msra.mxu0 %v595
        %602 = vmatprep.subr.bf16.mxu0 0
        %603 = vmatpush1.bf16.msra.mxu0 0
        %604 = vmatprep.subr.bf16.mxu0 0
        %605 = vmatpush1.bf16.msra.mxu0 0
        %606 = vmatprep.subr.bf16.mxu0 0
        %607 = vmatpush1.bf16.msra.mxu0 0
        %608 = vmatprep.subr.bf16.mxu0 0
        %609 = vmatpush1.bf16.msra.mxu0 0
        %610 = vmatprep.subr.bf16.mxu0 0
        %611 = vmatpush1.bf16.msra.mxu0 0
        %612 = vmatprep.subr.bf16.mxu0 0
        %613 = vmatpush1.bf16.msra.mxu0 0
        %614 = vmatprep.subr.bf16.mxu0 0
        %615 = vmatpush1.bf16.msra.mxu0 0
        %616 = vmatprep.subr.bf16.mxu0 0
        %617 = vmatpush1.bf16.msra.mxu0 0
        %618 = vmatprep.subr.bf16.mxu0 0
        %619 = vmatpush1.bf16.msra.mxu0 0
        %620 = vmatprep.subr.bf16.mxu0 0
        %621 = vmatpush1.bf16.msra.mxu0 0
        %622 = vmatprep.subr.bf16.mxu0 0
        %623 = vmatpush1.bf16.msra.mxu0 0
        %624 = vmatprep.subr.bf16.mxu0 0
        %625 = vmatpush1.bf16.msra.mxu0 0
        %626 = vmatprep.subr.bf16.mxu0 0
        %627 = vmatpush1.bf16.msra.mxu0 0
        %628 = vmatprep.subr.bf16.mxu0 0
        %629 = vmatpush1.bf16.msra.mxu0 0
        %630 = vmatprep.mubr.bf16.mxu0 0
        %631 = vmatmul.mubr.bf16.gmra.mrb[0].mxu0 %v538
        %v632 = vpop.f32.mrb[0].mxu0
        %v633 = vadd.f32 0.0, %v632
        %v634 = vpop.f32.mrb[0].mxu0
        %v635 = vpop.f32.mrb[0].mxu0
        %v636 = vadd.f32 0.0, %v635
        %v637 = vpop.f32.mrb[0].mxu0
        %638 = vdwg.mxu0
        %v639 = vpack.c.bf16 %v636, %v633
        %v640 = vld [vmem:[%s5] sm:$0xf]
        %v641 = vld [vmem:[%s5 + $0x4] sm:$0xf]
        %v642 = vld [vmem:[%s5 + $0x8] sm:$0xf]
        %v643 = vld [vmem:[%s5 + $0xc] sm:$0xf]
        %v646 = vunpack.c.l.b16 %v454
        %v647 = vunpack.c.l.b16 %v455
        %v648 = vpack.c.b16 %v647, %v646
        %v653 = vunpack.c.l.b16 %v640
        %v654 = vunpack.c.l.b16 %v641
        %v655 = vunpack.c.l.b16 %v642
        %v656 = vunpack.c.l.b16 %v643
        %v657 = vpack.c.b16 %v654, %v653
        %v658 = vpack.c.b16 %v656, %v655
        %v662 = vsel %vm472, %v648, 0
        %664 = vmatprep.subr.bf16.mxu0 0
        %665 = vmatpush1.bf16.msra.mxu0 %v657
        %666 = vmatprep.subr.bf16.mxu0 0
        %667 = vmatpush1.bf16.msra.mxu0 %v658
        %668 = vmatprep.subr.bf16.mxu0 0
        %669 = vmatpush1.bf16.msra.mxu0 0
        %670 = vmatprep.subr.bf16.mxu0 0
        %671 = vmatpush1.bf16.msra.mxu0 0
        %672 = vmatprep.subr.bf16.mxu0 0
        %673 = vmatpush1.bf16.msra.mxu0 0
        %674 = vmatprep.subr.bf16.mxu0 0
        %675 = vmatpush1.bf16.msra.mxu0 0
        %676 = vmatprep.subr.bf16.mxu0 0
        %677 = vmatpush1.bf16.msra.mxu0 0
        %678 = vmatprep.subr.bf16.mxu0 0
        %679 = vmatpush1.bf16.msra.mxu0 0
        %680 = vmatprep.subr.bf16.mxu0 0
        %681 = vmatpush1.bf16.msra.mxu0 0
        %682 = vmatprep.subr.bf16.mxu0 0
        %683 = vmatpush1.bf16.msra.mxu0 0
        %684 = vmatprep.subr.bf16.mxu0 0
        %685 = vmatpush1.bf16.msra.mxu0 0
        %686 = vmatprep.subr.bf16.mxu0 0
        %687 = vmatpush1.bf16.msra.mxu0 0
        %688 = vmatprep.subr.bf16.mxu0 0
        %689 = vmatpush1.bf16.msra.mxu0 0
        %690 = vmatprep.subr.bf16.mxu0 0
        %691 = vmatpush1.bf16.msra.mxu0 0
        %692 = vmatprep.subr.bf16.mxu0 0
        %693 = vmatpush1.bf16.msra.mxu0 0
        %694 = vmatprep.subr.bf16.mxu0 0
        %695 = vmatpush1.bf16.msra.mxu0 0
        %696 = vmatprep.mubr.bf16.mxu0 0
        %697 = vmatmul.mubr.bf16.gmra.mrb[0].mxu0 %v662
        %v698 = vpop.f32.mrb[0].mxu0
        %v699 = vadd.f32 0.0, %v698
        %v700 = vpop.f32.mrb[0].mxu0
        %v701 = vpop.f32.mrb[0].mxu0
        %v702 = vadd.f32 0.0, %v701
        %v703 = vpop.f32.mrb[0].mxu0
        %704 = vdwg.mxu0
        %v705 = vpack.c.bf16 %v702, %v699
        %v706 = vld [vmem:[%s7] sm:$0x1]
        %v708 = vlaneseq
        %v709 = vshrl.u32 %v708, 7
        %v710 = vsub.s32 0, %v709
        %v711 = vrot.slane %v706, %v710
        %v713 = vadd.f32 %v511, %v711
        %v714 = vmul.f32 %v713, 0.35355338
        %v715 = vpack.c.bf16 %v714, %v714
        %v716 = vld [vmem:[%s8] sm:$0x1]
        %v718 = vlaneseq
        %v719 = vshrl.u32 %v718, 7
        %v720 = vsub.s32 0, %v719
        %v721 = vrot.slane %v716, %v720
        %v723 = vadd.f32 %v511, %v721
        %v724 = vmul.f32 %v723, 0.35355338
        %v725 = vpack.c.bf16 %v724, %v724
        %v726 = vld [vmem:[%s9] sm:$0xff]
        %v727 = vld [vmem:[#allocation12] sm:$0xf]
        %v728 = vld [vmem:[#allocation12 + $0x4] sm:$0xf]
        %v729 = vld [vmem:[#allocation12 + $0x8] sm:$0xf]
        %v730 = vld [vmem:[#allocation12 + $0xc] sm:$0xf]
        %v731 = vlaneseq
        %v732 = vshrl.u32 %v731, 7
        %v733 = vlaneseq
        %v734 = vand.u32 %v733, 127
        %v735 = vadd.s32 %v732, 8
        %v736 = vsub.s32 7, %v732
        %v737 = vand.u32 %v736, 1
        %vm738 = vcmp.ne.s32.totalorder %v737, 0
        %v739 = vand.u32 %v736, 2
        %vm740 = vcmp.ne.s32.totalorder %v739, 0
        %v741 = vand.u32 %v736, 4
        %vm742 = vcmp.ne.s32.totalorder %v741, 0
        %v743 = vsub.s32 6, %v732
        %vm744 = vcmp.gt.s32.totalorder %v743, 0
        %v745 = vsel %vm744, %v743, 0
        %v746 = vand.u32 %v745, 1
        %vm747 = vcmp.ne.s32.totalorder %v746, 0
        %v748 = vand.u32 %v745, 2
        %vm749 = vcmp.ne.s32.totalorder %v748, 0
        %v750 = vand.u32 %v745, 4
        %vm751 = vcmp.ne.s32.totalorder %v750, 0
        %vm752 = vcmp.le.s32.totalorder %v734, %v735
        %v753 = vadd.s32 %v735, 1
        %vm754 = vcmp.eq.s32.totalorder %v734, %v753
        %vm755 = vcmask 64512
        %v757 = vsel %vm755, %v725, 0
        %v760 = vsel %vm755, %v705, 0
        %762 = vmatprep.subr.bf16.mxu0 0
        %763 = vmatpush1.bf16.xpose.msra.mxu0 %v760
        %764 = vmatprep.subr.bf16.mxu0 0
        %765 = vmatpush1.bf16.xpose.msra.mxu0 0
        %766 = vmatprep.subr.bf16.mxu0 0
        %767 = vmatpush1.bf16.xpose.msra.mxu0 0
        %768 = vmatprep.subr.bf16.mxu0 0
        %769 = vmatpush1.bf16.xpose.msra.mxu0 0
        %770 = vmatprep.subr.bf16.mxu0 0
        %771 = vmatpush1.bf16.xpose.msra.mxu0 0
        %772 = vmatprep.subr.bf16.mxu0 0
        %773 = vmatpush1.bf16.xpose.msra.mxu0 0
        %774 = vmatprep.subr.bf16.mxu0 0
        %775 = vmatpush1.bf16.xpose.msra.mxu0 0
        %776 = vmatprep.subr.bf16.mxu0 0
        %777 = vmatpush1.bf16.xpose.msra.mxu0 0
        %778 = vmatprep.subr.bf16.mxu0 0
        %779 = vmatpush1.bf16.xpose.msra.mxu0 0
        %780 = vmatprep.subr.bf16.mxu0 0
        %781 = vmatpush1.bf16.xpose.msra.mxu0 0
        %782 = vmatprep.subr.bf16.mxu0 0
        %783 = vmatpush1.bf16.xpose.msra.mxu0 0
        %784 = vmatprep.subr.bf16.mxu0 0
        %785 = vmatpush1.bf16.xpose.msra.mxu0 0
        %786 = vmatprep.subr.bf16.mxu0 0
        %787 = vmatpush1.bf16.xpose.msra.mxu0 0
        %788 = vmatprep.subr.bf16.mxu0 0
        %789 = vmatpush1.bf16.xpose.msra.mxu0 0
        %790 = vmatprep.subr.bf16.mxu0 0
        %791 = vmatpush1.bf16.xpose.msra.mxu0 0
        %792 = vmatprep.subr.bf16.mxu0 0
        %793 = vmatpush1.bf16.xpose.msra.mxu0 0
        %794 = vmatprep.mubr.bf16.mxu0 0
        %795 = vmatmul.mubr.bf16.gmra.mrb[0].mxu0 %v757
        %v796 = vpop.f32.mrb[0].mxu0
        %v797 = vadd.f32 0.0, %v796
        %v798 = vpop.f32.mrb[0].mxu0
        %v799 = vpop.f32.mrb[0].mxu0
        %v800 = vpop.f32.mrb[0].mxu0
        %801 = vdwg.mxu0
        %803 = vrot.lane.b32.xlu0 %v797, 127
        %v804 = vpop.permute.xlu0 %803
        %806 = vrot.lane.b32.xlu0 %v797, 15
        %v807 = vpop.permute.xlu0 %806
        %vm809 = vcmask 121856
        %v810 = vsel %vm809, %v804, %v807
        %v811 = vsel %vm738, 1, 0
        %vm812 = vcmp.eq.s32.totalorder %v811, 1
        %v813 = vsel %vm812, %v810, %v797
        %815 = vrot.lane.b32.xlu0 %v813, 126
        %v816 = vpop.permute.xlu0 %815
        %818 = vrot.lane.b32.xlu0 %v813, 14
        %v819 = vpop.permute.xlu0 %818
        %vm821 = vcmask 113664
        %v822 = vsel %vm821, %v816, %v819
        %v823 = vsel %vm740, 1, 0
        %vm824 = vcmp.eq.s32.totalorder %v823, 1
        %v825 = vsel %vm824, %v822, %v813
        %827 = vrot.lane.b32.xlu0 %v825, 124
        %v828 = vpop.permute.xlu0 %827
        %830 = vrot.lane.b32.xlu0 %v825, 12
        %v831 = vpop.permute.xlu0 %830
        %vm833 = vcmask 97280
        %v834 = vsel %vm833, %v828, %v831
        %v835 = vsel %vm742, 1, 0
        %vm836 = vcmp.eq.s32.totalorder %v835, 1
        %v837 = vsel %vm836, %v834, %v825
        %v838 = vrot.slane %v797, 1
        %vm840 = vcmask 1046528
        %v841 = vsel %vm840, %v838, 0.0
        %843 = vrot.lane.b32.xlu0 %v841, 127
        %v844 = vpop.permute.xlu0 %843
        %846 = vrot.lane.b32.xlu0 %v841, 15
        %v847 = vpop.permute.xlu0 %846
        %v849 = vsel %vm809, %v844, %v847
        %v850 = vsel %vm747, 1, 0
        %vm851 = vcmp.eq.s32.totalorder %v850, 1
        %v852 = vsel %vm851, %v849, %v841
        %854 = vrot.lane.b32.xlu0 %v852, 126
        %v855 = vpop.permute.xlu0 %854
        %857 = vrot.lane.b32.xlu0 %v852, 14
        %v858 = vpop.permute.xlu0 %857
        %v860 = vsel %vm821, %v855, %v858
        %v861 = vsel %vm749, 1, 0
        %vm862 = vcmp.eq.s32.totalorder %v861, 1
        %v863 = vsel %vm862, %v860, %v852
        %865 = vrot.lane.b32.xlu0 %v863, 124
        %v866 = vpop.permute.xlu0 %865
        %868 = vrot.lane.b32.xlu0 %v863, 12
        %v869 = vpop.permute.xlu0 %868
        %v871 = vsel %vm833, %v866, %v869
        %v872 = vsel %vm751, 1, 0
        %vm873 = vcmp.eq.s32.totalorder %v872, 1
        %v874 = vsel %vm873, %v871, %v863
        %v875 = vsel %vm754, 0.0, %v874
        %v876 = vsel %vm752, %v837, %v875
        %v878 = vsel %vm755, %v715, 0
        %v881 = vsel %vm755, %v581, 0
        %883 = vmatprep.subr.bf16.mxu0 0
        %884 = vmatpush1.bf16.xpose.msra.mxu0 %v881
        %885 = vmatprep.subr.bf16.mxu0 0
        %886 = vmatpush1.bf16.xpose.msra.mxu0 0
        %887 = vmatprep.subr.bf16.mxu0 0
        %888 = vmatpush1.bf16.xpose.msra.mxu0 0
        %889 = vmatprep.subr.bf16.mxu0 0
        %890 = vmatpush1.bf16.xpose.msra.mxu0 0
        %891 = vmatprep.subr.bf16.mxu0 0
        %892 = vmatpush1.bf16.xpose.msra.mxu0 0
        %893 = vmatprep.subr.bf16.mxu0 0
        %894 = vmatpush1.bf16.xpose.msra.mxu0 0
        %895 = vmatprep.subr.bf16.mxu0 0
        %896 = vmatpush1.bf16.xpose.msra.mxu0 0
        %897 = vmatprep.subr.bf16.mxu0 0
        %898 = vmatpush1.bf16.xpose.msra.mxu0 0
        %899 = vmatprep.subr.bf16.mxu0 0
        %900 = vmatpush1.bf16.xpose.msra.mxu0 0
        %901 = vmatprep.subr.bf16.mxu0 0
        %902 = vmatpush1.bf16.xpose.msra.mxu0 0
        %903 = vmatprep.subr.bf16.mxu0 0
        %904 = vmatpush1.bf16.xpose.msra.mxu0 0
        %905 = vmatprep.subr.bf16.mxu0 0
        %906 = vmatpush1.bf16.xpose.msra.mxu0 0
        %907 = vmatprep.subr.bf16.mxu0 0
        %908 = vmatpush1.bf16.xpose.msra.mxu0 0
        %909 = vmatprep.subr.bf16.mxu0 0
        %910 = vmatpush1.bf16.xpose.msra.mxu0 0
        %911 = vmatprep.subr.bf16.mxu0 0
        %912 = vmatpush1.bf16.xpose.msra.mxu0 0
        %913 = vmatprep.subr.bf16.mxu0 0
        %914 = vmatpush1.bf16.xpose.msra.mxu0 0
        %915 = vmatprep.mubr.bf16.mxu0 0
        %916 = vmatmul.mubr.bf16.gmra.mrb[0].mxu0 %v878
        %v917 = vpop.f32.mrb[0].mxu0
        %v918 = vadd.f32 %v876, %v917
        %v919 = vpop.f32.mrb[0].mxu0
        %v920 = vpop.f32.mrb[0].mxu0
        %v921 = vpop.f32.mrb[0].mxu0
        %922 = vdwg.mxu0
        %v923 = vadd.f32 %v918, %v726
        %vm924 = vcmask 130048
        %v925 = vsel %vm924, %v923, -inf
        %926 = vmax.xlane.f32.xlu0 %v925
        %v927 = vpop.xlane.xlu0 %926
        %v928 = vsub.f32 %v923, %v927
        %v929 = vmul.f32 %v928, 1.442695
        %v930 = vpow.pop %v929
        %v931 = vsel %vm924, %v930, 0.0
        %932 = vadd.xlane.f32.xlu0 %v931
        %v933 = vpop.xlane.xlu0 %932
        %v934 = vrcp.pop %v933
        %v935 = vmul.f32 %v930, %v934
        %v936 = vpack.c.bf16 %v935, %v935
        %v938 = vsel %vm924, %v936, 0
        %940 = vmatprep.subr.bf16.mxu0 0
        %941 = vmatpush1.bf16.msra.mxu0 %v639
        %942 = vmatprep.subr.bf16.mxu0 0
        %943 = vmatpush1.bf16.msra.mxu0 0
        %944 = vmatprep.subr.bf16.mxu0 0
        %945 = vmatpush1.bf16.msra.mxu0 0
        %946 = vmatprep.subr.bf16.mxu0 0
        %947 = vmatpush1.bf16.msra.mxu0 0
        %948 = vmatprep.subr.bf16.mxu0 0
        %949 = vmatpush1.bf16.msra.mxu0 0
        %950 = vmatprep.subr.bf16.mxu0 0
        %951 = vmatpush1.bf16.msra.mxu0 0
        %952 = vmatprep.subr.bf16.mxu0 0
        %953 = vmatpush1.bf16.msra.mxu0 0
        %954 = vmatprep.subr.bf16.mxu0 0
        %955 = vmatpush1.bf16.msra.mxu0 0
        %956 = vmatprep.subr.bf16.mxu0 0
        %957 = vmatpush1.bf16.msra.mxu0 0
        %958 = vmatprep.subr.bf16.mxu0 0
        %959 = vmatpush1.bf16.msra.mxu0 0
        %960 = vmatprep.subr.bf16.mxu0 0
        %961 = vmatpush1.bf16.msra.mxu0 0
        %962 = vmatprep.subr.bf16.mxu0 0
        %963 = vmatpush1.bf16.msra.mxu0 0
        %964 = vmatprep.subr.bf16.mxu0 0
        %965 = vmatpush1.bf16.msra.mxu0 0
        %966 = vmatprep.subr.bf16.mxu0 0
        %967 = vmatpush1.bf16.msra.mxu0 0
        %968 = vmatprep.subr.bf16.mxu0 0
        %969 = vmatpush1.bf16.msra.mxu0 0
        %970 = vmatprep.subr.bf16.mxu0 0
        %971 = vmatpush1.bf16.msra.mxu0 0
        %972 = vmatprep.mubr.bf16.mxu0 0
        %973 = vmatmul.mubr.bf16.gmra.mrb[0].mxu0 %v938
        %v974 = vpop.f32.mrb[0].mxu0
        %v975 = vadd.f32 0.0, %v974
        %v976 = vpop.f32.mrb[0].mxu0
        %v977 = vpop.f32.mrb[0].mxu0
        %v978 = vpop.f32.mrb[0].mxu0
        %979 = vdwg.mxu0
        %v980 = vpack.c.bf16 %v975, %v975
        %v982 = vsel %vm755, %v980, 0
        %vm984 = vcmask 1043456
        %v986 = vsel %vm984, %v727, 0
        %988 = vmatprep.subr.bf16.mxu0 0
        %989 = vmatpush1.bf16.msra.mxu0 %v986
        %990 = vmatprep.subr.bf16.mxu0 0
        %991 = vmatpush1.bf16.msra.mxu0 0
        %992 = vmatprep.subr.bf16.mxu0 0
        %993 = vmatpush1.bf16.msra.mxu0 0
        %994 = vmatprep.subr.bf16.mxu0 0
        %995 = vmatpush1.bf16.msra.mxu0 0
        %996 = vmatprep.subr.bf16.mxu0 0
        %997 = vmatpush1.bf16.msra.mxu0 0
        %998 = vmatprep.subr.bf16.mxu0 0
        %999 = vmatpush1.bf16.msra.mxu0 0
        %1000 = vmatprep.subr.bf16.mxu0 0
        %1001 = vmatpush1.bf16.msra.mxu0 0
        %1002 = vmatprep.subr.bf16.mxu0 0
        %1003 = vmatpush1.bf16.msra.mxu0 0
        %1004 = vmatprep.subr.bf16.mxu0 0
        %1005 = vmatpush1.bf16.msra.mxu0 0
        %1006 = vmatprep.subr.bf16.mxu0 0
        %1007 = vmatpush1.bf16.msra.mxu0 0
        %1008 = vmatprep.subr.bf16.mxu0 0
        %1009 = vmatpush1.bf16.msra.mxu0 0
        %1010 = vmatprep.subr.bf16.mxu0 0
        %1011 = vmatpush1.bf16.msra.mxu0 0
        %1012 = vmatprep.subr.bf16.mxu0 0
        %1013 = vmatpush1.bf16.msra.mxu0 0
        %1014 = vmatprep.subr.bf16.mxu0 0
        %1015 = vmatpush1.bf16.msra.mxu0 0
        %1016 = vmatprep.subr.bf16.mxu0 0
        %1017 = vmatpush1.bf16.msra.mxu0 0
        %1018 = vmatprep.subr.bf16.mxu0 0
        %1019 = vmatpush1.bf16.msra.mxu0 0
        %1020 = vmatprep.mubr.bf16.mxu0 0
        %1021 = vmatmul.mubr.bf16.gmra.mrb[0].mxu0 %v982
        %v1022 = vpop.f32.mrb[0].mxu0
        %v1023 = vadd.f32 0.0, %v1022
        %v1024 = vpop.f32.mrb[0].mxu0
        %v1025 = vpop.f32.mrb[0].mxu0
        %v1026 = vpop.f32.mrb[0].mxu0
        %1027 = vdwg.mxu0
        %1028 = vst.msk [vmem:[#allocation2] sm:$0xff] %vm472, %v1023
        %1030 = vrot.lane.b32.xlu0 %v725, 120
        %v1031 = vpop.permute.xlu0 %1030
        %1033 = vrot.lane.b32.xlu0 %v705, 120
        %v1034 = vpop.permute.xlu0 %1033
        %v1036 = vsel %vm755, %v1031, 0
        %v1039 = vsel %vm755, %v1034, 0
        %1041 = vmatprep.subr.bf16.mxu0 0
        %1042 = vmatpush1.bf16.xpose.msra.mxu0 %v1039
        %1043 = vmatprep.subr.bf16.mxu0 0
        %1044 = vmatpush1.bf16.xpose.msra.mxu0 0
        %1045 = vmatprep.subr.bf16.mxu0 0
        %1046 = vmatpush1.bf16.xpose.msra.mxu0 0
        %1047 = vmatprep.subr.bf16.mxu0 0
        %1048 = vmatpush1.bf16.xpose.msra.mxu0 0
        %1049 = vmatprep.subr.bf16.mxu0 0
        %1050 = vmatpush1.bf16.xpose.msra.mxu0 0
        %1051 = vmatprep.subr.bf16.mxu0 0
        %1052 = vmatpush1.bf16.xpose.msra.mxu0 0
        %1053 = vmatprep.subr.bf16.mxu0 0
        %1054 = vmatpush1.bf16.xpose.msra.mxu0 0
        %1055 = vmatprep.subr.bf16.mxu0 0
        %1056 = vmatpush1.bf16.xpose.msra.mxu0 0
        %1057 = vmatprep.subr.bf16.mxu0 0
        %1058 = vmatpush1.bf16.xpose.msra.mxu0 0
        %1059 = vmatprep.subr.bf16.mxu0 0
        %1060 = vmatpush1.bf16.xpose.msra.mxu0 0
        %1061 = vmatprep.subr.bf16.mxu0 0
        %1062 = vmatpush1.bf16.xpose.msra.mxu0 0
        %1063 = vmatprep.subr.bf16.mxu0 0
        %1064 = vmatpush1.bf16.xpose.msra.mxu0 0
        %1065 = vmatprep.subr.bf16.mxu0 0
        %1066 = vmatpush1.bf16.xpose.msra.mxu0 0
        %1067 = vmatprep.subr.bf16.mxu0 0
        %1068 = vmatpush1.bf16.xpose.msra.mxu0 0
        %1069 = vmatprep.subr.bf16.mxu0 0
        %1070 = vmatpush1.bf16.xpose.msra.mxu0 0
        %1071 = vmatprep.subr.bf16.mxu0 0
        %1072 = vmatpush1.bf16.xpose.msra.mxu0 0
        %1073 = vmatprep.mubr.bf16.mxu0 0
        %1074 = vmatmul.mubr.bf16.gmra.mrb[0].mxu0 %v1036
        %v1075 = vpop.f32.mrb[0].mxu0
        %v1076 = vadd.f32 0.0, %v1075
        %v1077 = vpop.f32.mrb[0].mxu0
        %v1078 = vpop.f32.mrb[0].mxu0
        %v1079 = vpop.f32.mrb[0].mxu0
        %1080 = vdwg.mxu0
        %1082 = vrot.lane.b32.xlu0 %v1076, 127
        %v1083 = vpop.permute.xlu0 %1082
        %1085 = vrot.lane.b32.xlu0 %v1076, 15
        %v1086 = vpop.permute.xlu0 %1085
        %v1088 = vsel %vm809, %v1083, %v1086
        %v1089 = vsel %vm812, %v1088, %v1076
        %1091 = vrot.lane.b32.xlu0 %v1089, 126
        %v1092 = vpop.permute.xlu0 %1091
        %1094 = vrot.lane.b32.xlu0 %v1089, 14
        %v1095 = vpop.permute.xlu0 %1094
        %v1097 = vsel %vm821, %v1092, %v1095
        %v1098 = vsel %vm824, %v1097, %v1089
        %1100 = vrot.lane.b32.xlu0 %v1098, 124
        %v1101 = vpop.permute.xlu0 %1100
        %1103 = vrot.lane.b32.xlu0 %v1098, 12
        %v1104 = vpop.permute.xlu0 %1103
        %v1106 = vsel %vm833, %v1101, %v1104
        %v1107 = vsel %vm836, %v1106, %v1098
        %v1108 = vrot.slane %v1076, 1
        %v1110 = vsel %vm840, %v1108, 0.0
        %1112 = vrot.lane.b32.xlu0 %v1110, 127
        %v1113 = vpop.permute.xlu0 %1112
        %1115 = vrot.lane.b32.xlu0 %v1110, 15
        %v1116 = vpop.permute.xlu0 %1115
        %v1118 = vsel %vm809, %v1113, %v1116
        %v1119 = vsel %vm851, %v1118, %v1110
        %1121 = vrot.lane.b32.xlu0 %v1119, 126
        %v1122 = vpop.permute.xlu0 %1121
        %1124 = vrot.lane.b32.xlu0 %v1119, 14
        %v1125 = vpop.permute.xlu0 %1124
        %v1127 = vsel %vm821, %v1122, %v1125
        %v1128 = vsel %vm862, %v1127, %v1119
        %1130 = vrot.lane.b32.xlu0 %v1128, 124
        %v1131 = vpop.permute.xlu0 %1130
        %1133 = vrot.lane.b32.xlu0 %v1128, 12
        %v1134 = vpop.permute.xlu0 %1133
        %v1136 = vsel %vm833, %v1131, %v1134
        %v1137 = vsel %vm873, %v1136, %v1128
        %v1138 = vsel %vm754, 0.0, %v1137
        %v1139 = vsel %vm752, %v1107, %v1138
        %1141 = vrot.lane.b32.xlu0 %v715, 120
        %v1142 = vpop.permute.xlu0 %1141
        %1144 = vrot.lane.b32.xlu0 %v581, 120
        %v1145 = vpop.permute.xlu0 %1144
        %v1147 = vsel %vm755, %v1142, 0
        %v1150 = vsel %vm755, %v1145, 0
        %1152 = vmatprep.subr.bf16.mxu0 0
        %1153 = vmatpush1.bf16.xpose.msra.mxu0 %v1150
        %1154 = vmatprep.subr.bf16.mxu0 0
        %1155 = vmatpush1.bf16.xpose.msra.mxu0 0
        %1156 = vmatprep.subr.bf16.mxu0 0
        %1157 = vmatpush1.bf16.xpose.msra.mxu0 0
        %1158 = vmatprep.subr.bf16.mxu0 0
        %1159 = vmatpush1.bf16.xpose.msra.mxu0 0
        %1160 = vmatprep.subr.bf16.mxu0 0
        %1161 = vmatpush1.bf16.xpose.msra.mxu0 0
        %1162 = vmatprep.subr.bf16.mxu0 0
        %1163 = vmatpush1.bf16.xpose.msra.mxu0 0
        %1164 = vmatprep.subr.bf16.mxu0 0
        %1165 = vmatpush1.bf16.xpose.msra.mxu0 0
        %1166 = vmatprep.subr.bf16.mxu0 0
        %1167 = vmatpush1.bf16.xpose.msra.mxu0 0
        %1168 = vmatprep.subr.bf16.mxu0 0
        %1169 = vmatpush1.bf16.xpose.msra.mxu0 0
        %1170 = vmatprep.subr.bf16.mxu0 0
        %1171 = vmatpush1.bf16.xpose.msra.mxu0 0
        %1172 = vmatprep.subr.bf16.mxu0 0
        %1173 = vmatpush1.bf16.xpose.msra.mxu0 0
        %1174 = vmatprep.subr.bf16.mxu0 0
        %1175 = vmatpush1.bf16.xpose.msra.mxu0 0
        %1176 = vmatprep.subr.bf16.mxu0 0
        %1177 = vmatpush1.bf16.xpose.msra.mxu0 0
        %1178 = vmatprep.subr.bf16.mxu0 0
        %1179 = vmatpush1.bf16.xpose.msra.mxu0 0
        %1180 = vmatprep.subr.bf16.mxu0 0
        %1181 = vmatpush1.bf16.xpose.msra.mxu0 0
        %1182 = vmatprep.subr.bf16.mxu0 0
        %1183 = vmatpush1.bf16.xpose.msra.mxu0 0
        %1184 = vmatprep.mubr.bf16.mxu0 0
        %1185 = vmatmul.mubr.bf16.gmra.mrb[0].mxu0 %v1147
        %v1186 = vpop.f32.mrb[0].mxu0
        %v1187 = vadd.f32 %v1139, %v1186
        %v1188 = vpop.f32.mrb[0].mxu0
        %v1189 = vpop.f32.mrb[0].mxu0
        %v1190 = vpop.f32.mrb[0].mxu0
        %1191 = vdwg.mxu0
        %v1192 = vadd.f32 %v1187, %v726
        %v1193 = vsel %vm924, %v1192, -inf
        %1194 = vmax.xlane.f32.xlu0 %v1193
        %v1195 = vpop.xlane.xlu0 %1194
        %v1196 = vsub.f32 %v1192, %v1195
        %v1197 = vmul.f32 %v1196, 1.442695
        %v1198 = vpow.pop %v1197
        %v1199 = vsel %vm924, %v1198, 0.0
        %1200 = vadd.xlane.f32.xlu0 %v1199
        %v1201 = vpop.xlane.xlu0 %1200
        %v1202 = vrcp.pop %v1201
        %v1203 = vmul.f32 %v1198, %v1202
        %v1204 = vpack.c.bf16 %v1203, %v1203
        %1206 = vrot.lane.b32.xlu0 %v639, 120
        %v1207 = vpop.permute.xlu0 %1206
        %v1210 = vsel %vm924, %v1204, 0
        %1212 = vmatprep.subr.bf16.mxu0 0
        %1213 = vmatpush1.bf16.msra.mxu0 %v1207
        %1214 = vmatprep.subr.bf16.mxu0 0
        %1215 = vmatpush1.bf16.msra.mxu0 0
        %1216 = vmatprep.subr.bf16.mxu0 0
        %1217 = vmatpush1.bf16.msra.mxu0 0
        %1218 = vmatprep.subr.bf16.mxu0 0
        %1219 = vmatpush1.bf16.msra.mxu0 0
        %1220 = vmatprep.subr.bf16.mxu0 0
        %1221 = vmatpush1.bf16.msra.mxu0 0
        %1222 = vmatprep.subr.bf16.mxu0 0
        %1223 = vmatpush1.bf16.msra.mxu0 0
        %1224 = vmatprep.subr.bf16.mxu0 0
        %1225 = vmatpush1.bf16.msra.mxu0 0
        %1226 = vmatprep.subr.bf16.mxu0 0
        %1227 = vmatpush1.bf16.msra.mxu0 0
        %1228 = vmatprep.subr.bf16.mxu0 0
        %1229 = vmatpush1.bf16.msra.mxu0 0
        %1230 = vmatprep.subr.bf16.mxu0 0
        %1231 = vmatpush1.bf16.msra.mxu0 0
        %1232 = vmatprep.subr.bf16.mxu0 0
        %1233 = vmatpush1.bf16.msra.mxu0 0
        %1234 = vmatprep.subr.bf16.mxu0 0
        %1235 = vmatpush1.bf16.msra.mxu0 0
        %1236 = vmatprep.subr.bf16.mxu0 0
        %1237 = vmatpush1.bf16.msra.mxu0 0
        %1238 = vmatprep.subr.bf16.mxu0 0
        %1239 = vmatpush1.bf16.msra.mxu0 0
        %1240 = vmatprep.subr.bf16.mxu0 0
        %1241 = vmatpush1.bf16.msra.mxu0 0
        %1242 = vmatprep.subr.bf16.mxu0 0
        %1243 = vmatpush1.bf16.msra.mxu0 0
        %1244 = vmatprep.mubr.bf16.mxu0 0
        %1245 = vmatmul.mubr.bf16.gmra.mrb[0].mxu0 %v1210
        %v1246 = vpop.f32.mrb[0].mxu0
        %v1247 = vadd.f32 0.0, %v1246
        %v1248 = vpop.f32.mrb[0].mxu0
        %v1249 = vpop.f32.mrb[0].mxu0
        %v1250 = vpop.f32.mrb[0].mxu0
        %1251 = vdwg.mxu0
        %v1252 = vpack.c.bf16 %v1247, %v1247
        %v1254 = vsel %vm755, %v1252, 0
        %v1257 = vsel %vm984, %v728, 0
        %1259 = vmatprep.subr.bf16.mxu0 0
        %1260 = vmatpush1.bf16.msra.mxu0 %v1257
        %1261 = vmatprep.subr.bf16.mxu0 0
        %1262 = vmatpush1.bf16.msra.mxu0 0
        %1263 = vmatprep.subr.bf16.mxu0 0
        %1264 = vmatpush1.bf16.msra.mxu0 0
        %1265 = vmatprep.subr.bf16.mxu0 0
        %1266 = vmatpush1.bf16.msra.mxu0 0
        %1267 = vmatprep.subr.bf16.mxu0 0
        %1268 = vmatpush1.bf16.msra.mxu0 0
        %1269 = vmatprep.subr.bf16.mxu0 0
        %1270 = vmatpush1.bf16.msra.mxu0 0
        %1271 = vmatprep.subr.bf16.mxu0 0
        %1272 = vmatpush1.bf16.msra.mxu0 0
        %1273 = vmatprep.subr.bf16.mxu0 0
        %1274 = vmatpush1.bf16.msra.mxu0 0
        %1275 = vmatprep.subr.bf16.mxu0 0
        %1276 = vmatpush1.bf16.msra.mxu0 0
        %1277 = vmatprep.subr.bf16.mxu0 0
        %1278 = vmatpush1.bf16.msra.mxu0 0
        %1279 = vmatprep.subr.bf16.mxu0 0
        %1280 = vmatpush1.bf16.msra.mxu0 0
        %1281 = vmatprep.subr.bf16.mxu0 0
        %1282 = vmatpush1.bf16.msra.mxu0 0
        %1283 = vmatprep.subr.bf16.mxu0 0
        %1284 = vmatpush1.bf16.msra.mxu0 0
        %1285 = vmatprep.subr.bf16.mxu0 0
        %1286 = vmatpush1.bf16.msra.mxu0 0
        %1287 = vmatprep.subr.bf16.mxu0 0
        %1288 = vmatpush1.bf16.msra.mxu0 0
        %1289 = vmatprep.subr.bf16.mxu0 0
        %1290 = vmatpush1.bf16.msra.mxu0 0
        %1291 = vmatprep.mubr.bf16.mxu0 0
        %1292 = vmatmul.mubr.bf16.gmra.mrb[0].mxu0 %v1254
        %v1293 = vpop.f32.mrb[0].mxu0
        %v1294 = vadd.f32 0.0, %v1293
        %v1295 = vpop.f32.mrb[0].mxu0
        %v1296 = vpop.f32.mrb[0].mxu0
        %v1297 = vpop.f32.mrb[0].mxu0
        %1298 = vdwg.mxu0
        %v1299 = vld [vmem:[#allocation2] sm:$0xff]
        %v1300 = vadd.f32 %v1299, %v1294
        %1301 = vst.msk [vmem:[#allocation2] sm:$0xff] %vm472, %v1300
        %1302 = vrot.lane.b32.xlu0 %v725, 112
        %v1303 = vpop.permute.xlu0 %1302
        %1304 = vrot.lane.b32.xlu0 %v705, 112
        %v1305 = vpop.permute.xlu0 %1304
        %v1307 = vsel %vm755, %v1303, 0
        %v1310 = vsel %vm755, %v1305, 0
        %1312 = vmatprep.subr.bf16.mxu0 0
        %1313 = vmatpush1.bf16.xpose.msra.mxu0 %v1310
        %1314 = vmatprep.subr.bf16.mxu0 0
        %1315 = vmatpush1.bf16.xpose.msra.mxu0 0
        %1316 = vmatprep.subr.bf16.mxu0 0
        %1317 = vmatpush1.bf16.xpose.msra.mxu0 0
        %1318 = vmatprep.subr.bf16.mxu0 0
        %1319 = vmatpush1.bf16.xpose.msra.mxu0 0
        %1320 = vmatprep.subr.bf16.mxu0 0
        %1321 = vmatpush1.bf16.xpose.msra.mxu0 0
        %1322 = vmatprep.subr.bf16.mxu0 0
        %1323 = vmatpush1.bf16.xpose.msra.mxu0 0
        %1324 = vmatprep.subr.bf16.mxu0 0
        %1325 = vmatpush1.bf16.xpose.msra.mxu0 0
        %1326 = vmatprep.subr.bf16.mxu0 0
        %1327 = vmatpush1.bf16.xpose.msra.mxu0 0
        %1328 = vmatprep.subr.bf16.mxu0 0
        %1329 = vmatpush1.bf16.xpose.msra.mxu0 0
        %1330 = vmatprep.subr.bf16.mxu0 0
        %1331 = vmatpush1.bf16.xpose.msra.mxu0 0
        %1332 = vmatprep.subr.bf16.mxu0 0
        %1333 = vmatpush1.bf16.xpose.msra.mxu0 0
        %1334 = vmatprep.subr.bf16.mxu0 0
        %1335 = vmatpush1.bf16.xpose.msra.mxu0 0
        %1336 = vmatprep.subr.bf16.mxu0 0
        %1337 = vmatpush1.bf16.xpose.msra.mxu0 0
        %1338 = vmatprep.subr.bf16.mxu0 0
        %1339 = vmatpush1.bf16.xpose.msra.mxu0 0
        %1340 = vmatprep.subr.bf16.mxu0 0
        %1341 = vmatpush1.bf16.xpose.msra.mxu0 0
        %1342 = vmatprep.subr.bf16.mxu0 0
        %1343 = vmatpush1.bf16.xpose.msra.mxu0 0
        %1344 = vmatprep.mubr.bf16.mxu0 0
        %1345 = vmatmul.mubr.bf16.gmra.mrb[0].mxu0 %v1307
        %v1346 = vpop.f32.mrb[0].mxu0
        %v1347 = vadd.f32 0.0, %v1346
        %v1348 = vpop.f32.mrb[0].mxu0
        %v1349 = vpop.f32.mrb[0].mxu0
        %v1350 = vpop.f32.mrb[0].mxu0
        %1351 = vdwg.mxu0
        %1353 = vrot.lane.b32.xlu0 %v1347, 127
        %v1354 = vpop.permute.xlu0 %1353
        %1356 = vrot.lane.b32.xlu0 %v1347, 15
        %v1357 = vpop.permute.xlu0 %1356
        %v1359 = vsel %vm809, %v1354, %v1357
        %v1360 = vsel %vm812, %v1359, %v1347
        %1362 = vrot.lane.b32.xlu0 %v1360, 126
        %v1363 = vpop.permute.xlu0 %1362
        %1365 = vrot.lane.b32.xlu0 %v1360, 14
        %v1366 = vpop.permute.xlu0 %1365
        %v1368 = vsel %vm821, %v1363, %v1366
        %v1369 = vsel %vm824, %v1368, %v1360
        %1371 = vrot.lane.b32.xlu0 %v1369, 124
        %v1372 = vpop.permute.xlu0 %1371
        %1374 = vrot.lane.b32.xlu0 %v1369, 12
        %v1375 = vpop.permute.xlu0 %1374
        %v1377 = vsel %vm833, %v1372, %v1375
        %v1378 = vsel %vm836, %v1377, %v1369
        %v1379 = vrot.slane %v1347, 1
        %v1381 = vsel %vm840, %v1379, 0.0
        %1383 = vrot.lane.b32.xlu0 %v1381, 127
        %v1384 = vpop.permute.xlu0 %1383
        %1386 = vrot.lane.b32.xlu0 %v1381, 15
        %v1387 = vpop.permute.xlu0 %1386
        %v1389 = vsel %vm809, %v1384, %v1387
        %v1390 = vsel %vm851, %v1389, %v1381
        %1392 = vrot.lane.b32.xlu0 %v1390, 126
        %v1393 = vpop.permute.xlu0 %1392
        %1395 = vrot.lane.b32.xlu0 %v1390, 14
        %v1396 = vpop.permute.xlu0 %1395
        %v1398 = vsel %vm821, %v1393, %v1396
        %v1399 = vsel %vm862, %v1398, %v1390
        %1401 = vrot.lane.b32.xlu0 %v1399, 124
        %v1402 = vpop.permute.xlu0 %1401
        %1404 = vrot.lane.b32.xlu0 %v1399, 12
        %v1405 = vpop.permute.xlu0 %1404
        %v1407 = vsel %vm833, %v1402, %v1405
        %v1408 = vsel %vm873, %v1407, %v1399
        %v1409 = vsel %vm754, 0.0, %v1408
        %v1410 = vsel %vm752, %v1378, %v1409
        %1411 = vrot.lane.b32.xlu0 %v715, 112
        %v1412 = vpop.permute.xlu0 %1411
        %1413 = vrot.lane.b32.xlu0 %v581, 112
        %v1414 = vpop.permute.xlu0 %1413
        %v1416 = vsel %vm755, %v1412, 0
        %v1419 = vsel %vm755, %v1414, 0
        %1421 = vmatprep.subr.bf16.mxu0 0
        %1422 = vmatpush1.bf16.xpose.msra.mxu0 %v1419
        %1423 = vmatprep.subr.bf16.mxu0 0
        %1424 = vmatpush1.bf16.xpose.msra.mxu0 0
        %1425 = vmatprep.subr.bf16.mxu0 0
        %1426 = vmatpush1.bf16.xpose.msra.mxu0 0
        %1427 = vmatprep.subr.bf16.mxu0 0
        %1428 = vmatpush1.bf16.xpose.msra.mxu0 0
        %1429 = vmatprep.subr.bf16.mxu0 0
        %1430 = vmatpush1.bf16.xpose.msra.mxu0 0
        %1431 = vmatprep.subr.bf16.mxu0 0
        %1432 = vmatpush1.bf16.xpose.msra.mxu0 0
        %1433 = vmatprep.subr.bf16.mxu0 0
        %1434 = vmatpush1.bf16.xpose.msra.mxu0 0
        %1435 = vmatprep.subr.bf16.mxu0 0
        %1436 = vmatpush1.bf16.xpose.msra.mxu0 0
        %1437 = vmatprep.subr.bf16.mxu0 0
        %1438 = vmatpush1.bf16.xpose.msra.mxu0 0
        %1439 = vmatprep.subr.bf16.mxu0 0
        %1440 = vmatpush1.bf16.xpose.msra.mxu0 0
        %1441 = vmatprep.subr.bf16.mxu0 0
        %1442 = vmatpush1.bf16.xpose.msra.mxu0 0
        %1443 = vmatprep.subr.bf16.mxu0 0
        %1444 = vmatpush1.bf16.xpose.msra.mxu0 0
        %1445 = vmatprep.subr.bf16.mxu0 0
        %1446 = vmatpush1.bf16.xpose.msra.mxu0 0
        %1447 = vmatprep.subr.bf16.mxu0 0
        %1448 = vmatpush1.bf16.xpose.msra.mxu0 0
        %1449 = vmatprep.subr.bf16.mxu0 0
        %1450 = vmatpush1.bf16.xpose.msra.mxu0 0
        %1451 = vmatprep.subr.bf16.mxu0 0
        %1452 = vmatpush1.bf16.xpose.msra.mxu0 0
        %1453 = vmatprep.mubr.bf16.mxu0 0
        %1454 = vmatmul.mubr.bf16.gmra.mrb[0].mxu0 %v1416
        %v1455 = vpop.f32.mrb[0].mxu0
        %v1456 = vadd.f32 %v1410, %v1455
        %v1457 = vpop.f32.mrb[0].mxu0
        %v1458 = vpop.f32.mrb[0].mxu0
        %v1459 = vpop.f32.mrb[0].mxu0
        %1460 = vdwg.mxu0
        %v1461 = vadd.f32 %v1456, %v726
        %v1462 = vsel %vm924, %v1461, -inf
        %1463 = vmax.xlane.f32.xlu0 %v1462
        %v1464 = vpop.xlane.xlu0 %1463
        %v1465 = vsub.f32 %v1461, %v1464
        %v1466 = vmul.f32 %v1465, 1.442695
        %v1467 = vpow.pop %v1466
        %v1468 = vsel %vm924, %v1467, 0.0
        %1469 = vadd.xlane.f32.xlu0 %v1468
        %v1470 = vpop.xlane.xlu0 %1469
        %v1471 = vrcp.pop %v1470
        %v1472 = vmul.f32 %v1467, %v1471
        %v1473 = vpack.c.bf16 %v1472, %v1472
        %1474 = vrot.lane.b32.xlu0 %v639, 112
        %v1475 = vpop.permute.xlu0 %1474
        %v1478 = vsel %vm924, %v1473, 0
        %1480 = vmatprep.subr.bf16.mxu0 0
        %1481 = vmatpush1.bf16.msra.mxu0 %v1475
        %1482 = vmatprep.subr.bf16.mxu0 0
        %1483 = vmatpush1.bf16.msra.mxu0 0
        %1484 = vmatprep.subr.bf16.mxu0 0
        %1485 = vmatpush1.bf16.msra.mxu0 0
        %1486 = vmatprep.subr.bf16.mxu0 0
        %1487 = vmatpush1.bf16.msra.mxu0 0
        %1488 = vmatprep.subr.bf16.mxu0 0
        %1489 = vmatpush1.bf16.msra.mxu0 0
        %1490 = vmatprep.subr.bf16.mxu0 0
        %1491 = vmatpush1.bf16.msra.mxu0 0
        %1492 = vmatprep.subr.bf16.mxu0 0
        %1493 = vmatpush1.bf16.msra.mxu0 0
        %1494 = vmatprep.subr.bf16.mxu0 0
        %1495 = vmatpush1.bf16.msra.mxu0 0
        %1496 = vmatprep.subr.bf16.mxu0 0
        %1497 = vmatpush1.bf16.msra.mxu0 0
        %1498 = vmatprep.subr.bf16.mxu0 0
        %1499 = vmatpush1.bf16.msra.mxu0 0
        %1500 = vmatprep.subr.bf16.mxu0 0
        %1501 = vmatpush1.bf16.msra.mxu0 0
        %1502 = vmatprep.subr.bf16.mxu0 0
        %1503 = vmatpush1.bf16.msra.mxu0 0
        %1504 = vmatprep.subr.bf16.mxu0 0
        %1505 = vmatpush1.bf16.msra.mxu0 0
        %1506 = vmatprep.subr.bf16.mxu0 0
        %1507 = vmatpush1.bf16.msra.mxu0 0
        %1508 = vmatprep.subr.bf16.mxu0 0
        %1509 = vmatpush1.bf16.msra.mxu0 0
        %1510 = vmatprep.subr.bf16.mxu0 0
        %1511 = vmatpush1.bf16.msra.mxu0 0
        %1512 = vmatprep.mubr.bf16.mxu0 0
        %1513 = vmatmul.mubr.bf16.gmra.mrb[0].mxu0 %v1478
        %v1514 = vpop.f32.mrb[0].mxu0
        %v1515 = vadd.f32 0.0, %v1514
        %v1516 = vpop.f32.mrb[0].mxu0
        %v1517 = vpop.f32.mrb[0].mxu0
        %v1518 = vpop.f32.mrb[0].mxu0
        %1519 = vdwg.mxu0
        %v1520 = vpack.c.bf16 %v1515, %v1515
        %v1522 = vsel %vm755, %v1520, 0
        %v1525 = vsel %vm984, %v729, 0
        %1527 = vmatprep.subr.bf16.mxu0 0
        %1528 = vmatpush1.bf16.msra.mxu0 %v1525
        %1529 = vmatprep.subr.bf16.mxu0 0
        %1530 = vmatpush1.bf16.msra.mxu0 0
        %1531 = vmatprep.subr.bf16.mxu0 0
        %1532 = vmatpush1.bf16.msra.mxu0 0
        %1533 = vmatprep.subr.bf16.mxu0 0
        %1534 = vmatpush1.bf16.msra.mxu0 0
        %1535 = vmatprep.subr.bf16.mxu0 0
        %1536 = vmatpush1.bf16.msra.mxu0 0
        %1537 = vmatprep.subr.bf16.mxu0 0
        %1538 = vmatpush1.bf16.msra.mxu0 0
        %1539 = vmatprep.subr.bf16.mxu0 0
        %1540 = vmatpush1.bf16.msra.mxu0 0
        %1541 = vmatprep.subr.bf16.mxu0 0
        %1542 = vmatpush1.bf16.msra.mxu0 0
        %1543 = vmatprep.subr.bf16.mxu0 0
        %1544 = vmatpush1.bf16.msra.mxu0 0
        %1545 = vmatprep.subr.bf16.mxu0 0
        %1546 = vmatpush1.bf16.msra.mxu0 0
        %1547 = vmatprep.subr.bf16.mxu0 0
        %1548 = vmatpush1.bf16.msra.mxu0 0
        %1549 = vmatprep.subr.bf16.mxu0 0
        %1550 = vmatpush1.bf16.msra.mxu0 0
        %1551 = vmatprep.subr.bf16.mxu0 0
        %1552 = vmatpush1.bf16.msra.mxu0 0
        %1553 = vmatprep.subr.bf16.mxu0 0
        %1554 = vmatpush1.bf16.msra.mxu0 0
        %1555 = vmatprep.subr.bf16.mxu0 0
        %1556 = vmatpush1.bf16.msra.mxu0 0
        %1557 = vmatprep.subr.bf16.mxu0 0
        %1558 = vmatpush1.bf16.msra.mxu0 0
        %1559 = vmatprep.mubr.bf16.mxu0 0
        %1560 = vmatmul.mubr.bf16.gmra.mrb[0].mxu0 %v1522
        %v1561 = vpop.f32.mrb[0].mxu0
        %v1562 = vadd.f32 0.0, %v1561
        %v1563 = vpop.f32.mrb[0].mxu0
        %v1564 = vpop.f32.mrb[0].mxu0
        %v1565 = vpop.f32.mrb[0].mxu0
        %1566 = vdwg.mxu0
        %v1567 = vld [vmem:[#allocation2] sm:$0xff]
        %v1568 = vadd.f32 %v1567, %v1562
        %1569 = vst.msk [vmem:[#allocation2] sm:$0xff] %vm472, %v1568
        %1570 = vrot.lane.b32.xlu0 %v725, 104
        %v1571 = vpop.permute.xlu0 %1570
        %1572 = vrot.lane.b32.xlu0 %v705, 104
        %v1573 = vpop.permute.xlu0 %1572
        %v1575 = vsel %vm755, %v1571, 0
        %v1578 = vsel %vm755, %v1573, 0
        %1580 = vmatprep.subr.bf16.mxu0 0
        %1581 = vmatpush1.bf16.xpose.msra.mxu0 %v1578
        %1582 = vmatprep.subr.bf16.mxu0 0
        %1583 = vmatpush1.bf16.xpose.msra.mxu0 0
        %1584 = vmatprep.subr.bf16.mxu0 0
        %1585 = vmatpush1.bf16.xpose.msra.mxu0 0
        %1586 = vmatprep.subr.bf16.mxu0 0
        %1587 = vmatpush1.bf16.xpose.msra.mxu0 0
        %1588 = vmatprep.subr.bf16.mxu0 0
        %1589 = vmatpush1.bf16.xpose.msra.mxu0 0
        %1590 = vmatprep.subr.bf16.mxu0 0
        %1591 = vmatpush1.bf16.xpose.msra.mxu0 0
        %1592 = vmatprep.subr.bf16.mxu0 0
        %1593 = vmatpush1.bf16.xpose.msra.mxu0 0
        %1594 = vmatprep.subr.bf16.mxu0 0
        %1595 = vmatpush1.bf16.xpose.msra.mxu0 0
        %1596 = vmatprep.subr.bf16.mxu0 0
        %1597 = vmatpush1.bf16.xpose.msra.mxu0 0
        %1598 = vmatprep.subr.bf16.mxu0 0
        %1599 = vmatpush1.bf16.xpose.msra.mxu0 0
        %1600 = vmatprep.subr.bf16.mxu0 0
        %1601 = vmatpush1.bf16.xpose.msra.mxu0 0
        %1602 = vmatprep.subr.bf16.mxu0 0
        %1603 = vmatpush1.bf16.xpose.msra.mxu0 0
        %1604 = vmatprep.subr.bf16.mxu0 0
        %1605 = vmatpush1.bf16.xpose.msra.mxu0 0
        %1606 = vmatprep.subr.bf16.mxu0 0
        %1607 = vmatpush1.bf16.xpose.msra.mxu0 0
        %1608 = vmatprep.subr.bf16.mxu0 0
        %1609 = vmatpush1.bf16.xpose.msra.mxu0 0
        %1610 = vmatprep.subr.bf16.mxu0 0
        %1611 = vmatpush1.bf16.xpose.msra.mxu0 0
        %1612 = vmatprep.mubr.bf16.mxu0 0
        %1613 = vmatmul.mubr.bf16.gmra.mrb[0].mxu0 %v1575
        %v1614 = vpop.f32.mrb[0].mxu0
        %v1615 = vadd.f32 0.0, %v1614
        %v1616 = vpop.f32.mrb[0].mxu0
        %v1617 = vpop.f32.mrb[0].mxu0
        %v1618 = vpop.f32.mrb[0].mxu0
        %1619 = vdwg.mxu0
        %1621 = vrot.lane.b32.xlu0 %v1615, 127
        %v1622 = vpop.permute.xlu0 %1621
        %1624 = vrot.lane.b32.xlu0 %v1615, 15
        %v1625 = vpop.permute.xlu0 %1624
        %v1627 = vsel %vm809, %v1622, %v1625
        %v1628 = vsel %vm812, %v1627, %v1615
        %1630 = vrot.lane.b32.xlu0 %v1628, 126
        %v1631 = vpop.permute.xlu0 %1630
        %1633 = vrot.lane.b32.xlu0 %v1628, 14
        %v1634 = vpop.permute.xlu0 %1633
        %v1636 = vsel %vm821, %v1631, %v1634
        %v1637 = vsel %vm824, %v1636, %v1628
        %1639 = vrot.lane.b32.xlu0 %v1637, 124
        %v1640 = vpop.permute.xlu0 %1639
        %1642 = vrot.lane.b32.xlu0 %v1637, 12
        %v1643 = vpop.permute.xlu0 %1642
        %v1645 = vsel %vm833, %v1640, %v1643
        %v1646 = vsel %vm836, %v1645, %v1637
        %v1647 = vrot.slane %v1615, 1
        %v1649 = vsel %vm840, %v1647, 0.0
        %1651 = vrot.lane.b32.xlu0 %v1649, 127
        %v1652 = vpop.permute.xlu0 %1651
        %1654 = vrot.lane.b32.xlu0 %v1649, 15
        %v1655 = vpop.permute.xlu0 %1654
        %v1657 = vsel %vm809, %v1652, %v1655
        %v1658 = vsel %vm851, %v1657, %v1649
        %1660 = vrot.lane.b32.xlu0 %v1658, 126
        %v1661 = vpop.permute.xlu0 %1660
        %1663 = vrot.lane.b32.xlu0 %v1658, 14
        %v1664 = vpop.permute.xlu0 %1663
        %v1666 = vsel %vm821, %v1661, %v1664
        %v1667 = vsel %vm862, %v1666, %v1658
        %1669 = vrot.lane.b32.xlu0 %v1667, 124
        %v1670 = vpop.permute.xlu0 %1669
        %1672 = vrot.lane.b32.xlu0 %v1667, 12
        %v1673 = vpop.permute.xlu0 %1672
        %v1675 = vsel %vm833, %v1670, %v1673
        %v1676 = vsel %vm873, %v1675, %v1667
        %v1677 = vsel %vm754, 0.0, %v1676
        %v1678 = vsel %vm752, %v1646, %v1677
        %1679 = vrot.lane.b32.xlu0 %v715, 104
        %v1680 = vpop.permute.xlu0 %1679
        %1681 = vrot.lane.b32.xlu0 %v581, 104
        %v1682 = vpop.permute.xlu0 %1681
        %v1684 = vsel %vm755, %v1680, 0
        %v1687 = vsel %vm755, %v1682, 0
        %1689 = vmatprep.subr.bf16.mxu0 0
        %1690 = vmatpush1.bf16.xpose.msra.mxu0 %v1687
        %1691 = vmatprep.subr.bf16.mxu0 0
        %1692 = vmatpush1.bf16.xpose.msra.mxu0 0
        %1693 = vmatprep.subr.bf16.mxu0 0
        %1694 = vmatpush1.bf16.xpose.msra.mxu0 0
        %1695 = vmatprep.subr.bf16.mxu0 0
        %1696 = vmatpush1.bf16.xpose.msra.mxu0 0
        %1697 = vmatprep.subr.bf16.mxu0 0
        %1698 = vmatpush1.bf16.xpose.msra.mxu0 0
        %1699 = vmatprep.subr.bf16.mxu0 0
        %1700 = vmatpush1.bf16.xpose.msra.mxu0 0
        %1701 = vmatprep.subr.bf16.mxu0 0
        %1702 = vmatpush1.bf16.xpose.msra.mxu0 0
        %1703 = vmatprep.subr.bf16.mxu0 0
        %1704 = vmatpush1.bf16.xpose.msra.mxu0 0
        %1705 = vmatprep.subr.bf16.mxu0 0
        %1706 = vmatpush1.bf16.xpose.msra.mxu0 0
        %1707 = vmatprep.subr.bf16.mxu0 0
        %1708 = vmatpush1.bf16.xpose.msra.mxu0 0
        %1709 = vmatprep.subr.bf16.mxu0 0
        %1710 = vmatpush1.bf16.xpose.msra.mxu0 0
        %1711 = vmatprep.subr.bf16.mxu0 0
        %1712 = vmatpush1.bf16.xpose.msra.mxu0 0
        %1713 = vmatprep.subr.bf16.mxu0 0
        %1714 = vmatpush1.bf16.xpose.msra.mxu0 0
        %1715 = vmatprep.subr.bf16.mxu0 0
        %1716 = vmatpush1.bf16.xpose.msra.mxu0 0
        %1717 = vmatprep.subr.bf16.mxu0 0
        %1718 = vmatpush1.bf16.xpose.msra.mxu0 0
        %1719 = vmatprep.subr.bf16.mxu0 0
        %1720 = vmatpush1.bf16.xpose.msra.mxu0 0
        %1721 = vmatprep.mubr.bf16.mxu0 0
        %1722 = vmatmul.mubr.bf16.gmra.mrb[0].mxu0 %v1684
        %v1723 = vpop.f32.mrb[0].mxu0
        %v1724 = vadd.f32 %v1678, %v1723
        %v1725 = vpop.f32.mrb[0].mxu0
        %v1726 = vpop.f32.mrb[0].mxu0
        %v1727 = vpop.f32.mrb[0].mxu0
        %1728 = vdwg.mxu0
        %v1729 = vadd.f32 %v1724, %v726
        %v1730 = vsel %vm924, %v1729, -inf
        %1731 = vmax.xlane.f32.xlu0 %v1730
        %v1732 = vpop.xlane.xlu0 %1731
        %v1733 = vsub.f32 %v1729, %v1732
        %v1734 = vmul.f32 %v1733, 1.442695
        %v1735 = vpow.pop %v1734
        %v1736 = vsel %vm924, %v1735, 0.0
        %1737 = vadd.xlane.f32.xlu0 %v1736
        %v1738 = vpop.xlane.xlu0 %1737
        %v1739 = vrcp.pop %v1738
        %v1740 = vmul.f32 %v1735, %v1739
        %v1741 = vpack.c.bf16 %v1740, %v1740
        %1742 = vrot.lane.b32.xlu0 %v639, 104
        %v1743 = vpop.permute.xlu0 %1742
        %v1746 = vsel %vm924, %v1741, 0
        %1748 = vmatprep.subr.bf16.mxu0 0
        %1749 = vmatpush1.bf16.msra.mxu0 %v1743
        %1750 = vmatprep.subr.bf16.mxu0 0
        %1751 = vmatpush1.bf16.msra.mxu0 0
        %1752 = vmatprep.subr.bf16.mxu0 0
        %1753 = vmatpush1.bf16.msra.mxu0 0
        %1754 = vmatprep.subr.bf16.mxu0 0
        %1755 = vmatpush1.bf16.msra.mxu0 0
        %1756 = vmatprep.subr.bf16.mxu0 0
        %1757 = vmatpush1.bf16.msra.mxu0 0
        %1758 = vmatprep.subr.bf16.mxu0 0
        %1759 = vmatpush1.bf16.msra.mxu0 0
        %1760 = vmatprep.subr.bf16.mxu0 0
        %1761 = vmatpush1.bf16.msra.mxu0 0
        %1762 = vmatprep.subr.bf16.mxu0 0
        %1763 = vmatpush1.bf16.msra.mxu0 0
        %1764 = vmatprep.subr.bf16.mxu0 0
        %1765 = vmatpush1.bf16.msra.mxu0 0
        %1766 = vmatprep.subr.bf16.mxu0 0
        %1767 = vmatpush1.bf16.msra.mxu0 0
        %1768 = vmatprep.subr.bf16.mxu0 0
        %1769 = vmatpush1.bf16.msra.mxu0 0
        %1770 = vmatprep.subr.bf16.mxu0 0
        %1771 = vmatpush1.bf16.msra.mxu0 0
        %1772 = vmatprep.subr.bf16.mxu0 0
        %1773 = vmatpush1.bf16.msra.mxu0 0
        %1774 = vmatprep.subr.bf16.mxu0 0
        %1775 = vmatpush1.bf16.msra.mxu0 0
        %1776 = vmatprep.subr.bf16.mxu0 0
        %1777 = vmatpush1.bf16.msra.mxu0 0
        %1778 = vmatprep.subr.bf16.mxu0 0
        %1779 = vmatpush1.bf16.msra.mxu0 0
        %1780 = vmatprep.mubr.bf16.mxu0 0
        %1781 = vmatmul.mubr.bf16.gmra.mrb[0].mxu0 %v1746
        %v1782 = vpop.f32.mrb[0].mxu0
        %v1783 = vadd.f32 0.0, %v1782
        %v1784 = vpop.f32.mrb[0].mxu0
        %v1785 = vpop.f32.mrb[0].mxu0
        %v1786 = vpop.f32.mrb[0].mxu0
        %1787 = vdwg.mxu0
        %v1788 = vpack.c.bf16 %v1783, %v1783
        %v1790 = vsel %vm755, %v1788, 0
        %v1793 = vsel %vm984, %v730, 0
        %1795 = vmatprep.subr.bf16.mxu0 0
        %1796 = vmatpush1.bf16.msra.mxu0 %v1793
        %1797 = vmatprep.subr.bf16.mxu0 0
        %1798 = vmatpush1.bf16.msra.mxu0 0
        %1799 = vmatprep.subr.bf16.mxu0 0
        %1800 = vmatpush1.bf16.msra.mxu0 0
        %1801 = vmatprep.subr.bf16.mxu0 0
        %1802 = vmatpush1.bf16.msra.mxu0 0
        %1803 = vmatprep.subr.bf16.mxu0 0
        %1804 = vmatpush1.bf16.msra.mxu0 0
        %1805 = vmatprep.subr.bf16.mxu0 0
        %1806 = vmatpush1.bf16.msra.mxu0 0
        %1807 = vmatprep.subr.bf16.mxu0 0
        %1808 = vmatpush1.bf16.msra.mxu0 0
        %1809 = vmatprep.subr.bf16.mxu0 0
        %1810 = vmatpush1.bf16.msra.mxu0 0
        %1811 = vmatprep.subr.bf16.mxu0 0
        %1812 = vmatpush1.bf16.msra.mxu0 0
        %1813 = vmatprep.subr.bf16.mxu0 0
        %1814 = vmatpush1.bf16.msra.mxu0 0
        %1815 = vmatprep.subr.bf16.mxu0 0
        %1816 = vmatpush1.bf16.msra.mxu0 0
        %1817 = vmatprep.subr.bf16.mxu0 0
        %1818 = vmatpush1.bf16.msra.mxu0 0
        %1819 = vmatprep.subr.bf16.mxu0 0
        %1820 = vmatpush1.bf16.msra.mxu0 0
        %1821 = vmatprep.subr.bf16.mxu0 0
        %1822 = vmatpush1.bf16.msra.mxu0 0
        %1823 = vmatprep.subr.bf16.mxu0 0
        %1824 = vmatpush1.bf16.msra.mxu0 0
        %1825 = vmatprep.subr.bf16.mxu0 0
        %1826 = vmatpush1.bf16.msra.mxu0 0
        %1827 = vmatprep.mubr.bf16.mxu0 0
        %1828 = vmatmul.mubr.bf16.gmra.mrb[0].mxu0 %v1790
        %v1829 = vpop.f32.mrb[0].mxu0
        %v1830 = vadd.f32 0.0, %v1829
        %v1831 = vpop.f32.mrb[0].mxu0
        %v1832 = vpop.f32.mrb[0].mxu0
        %v1833 = vpop.f32.mrb[0].mxu0
        %1834 = vdwg.mxu0
        %v1835 = vld [vmem:[#allocation2] sm:$0xff]
        %v1836 = vadd.f32 %v1835, %v1830
        %1837 = vst.msk [vmem:[#allocation2] sm:$0xff] %vm472, %v1836
        %v1838 = vld [vmem:[#allocation2] sm:$0xff]
        %1839 = vst.msk [vmem:[%s450] sm:$0xff] %vm472, %v1838
        %s1840 = sand.u32 %s253, 1
        %s1841 = scalar_lea.sflag [#allocation5], %s1840
        %s1842 = sand.u32 %s253, 1
        %s1843 = smul.addr %s1842, 8
        %s1844 = scalar_lea.vmem [#allocation14], %s1843
        // Predicated region
        $region85: #{tpu_custom_call.1} parent=59 // pred_check
          %p1845 = pneg %p263
        $region86: #{tpu_custom_call.1} parent=59 // pred_check_branch
          %1847 = sbr.rel (%p1845) target = $region88
        $region87: #{tpu_custom_call.1} parent=59 // pred_region
          %s1849 = ssub.s32 128, 128
          %1850 = vsyncadd %s1841, %s1849
          %s1851 = smul.addr %s30, 128
          %s1852 = scalar_lea.hbm %s10, %s1851
          %s1854 = sshll.u32 %s1844, 4
          %s1855 = int_to_ptr.vmem [resolvable:$true] %s1854
          %1857 = dma.vmem_to_hbm [thread:$0]  %s1855, 128, %s1852, %s1841
        $region88: #{tpu_custom_call.1} parent=59 // pred_fallthru
          _
      $region60: #{tpu_custom_call.1} parent=5 // pred_fallthru
        _
      %p1858 = scmp.le.s32.totalorder 2, %s25
      // Predicated region
      $region89: #{tpu_custom_call.1} parent=5 // pred_check
        %p1859 = pneg %p1858
      $region90: #{tpu_custom_call.1} parent=5 // pred_check_branch
        %1861 = sbr.rel (%p1859) target = $region92
      $region91: #{tpu_custom_call.1} parent=5 // pred_region
        %s1862 = ssub.s32 %s25, 2
        // Predicated region
        $region93: #{tpu_custom_call.1} parent=91 // pred_check
          %p1863 = pneg %p269
        $region94: #{tpu_custom_call.1} parent=91 // pred_check_branch
          %1865 = sbr.rel (%p1863) target = $region96
        $region95: #{tpu_custom_call.1} parent=91 // pred_region
          %s1866 = sand.u32 %s254, 1
          %s1867 = scalar_lea.sflag [#allocation5], %s1866
          %s1868 = sand.u32 %s254, 1
          %s1869 = smul.addr %s1868, 8
          %s1870 = scalar_lea.vmem [#allocation14], %s1869
          %1871 = dma.done %s1867, 128
        $region96: #{tpu_custom_call.1} parent=91 // pred_fallthru
          _
      $region92: #{tpu_custom_call.1} parent=5 // pred_fallthru
        _
    $region6: #{tpu_custom_call.1} parent=1 // loop_footer
      %s29 = sadd.s32 1, %s25
    $region7: #{tpu_custom_call.1} parent=1 // loop_footer_branch
      %24 = sbr.rel target = $region3
    $region8: #{tpu_custom_call.1} parent=1 // loop_exit
      _
    %1872 = vsyncpa [#allocation4], 1
    %s1873 = scalar_lea.sflag [#allocation4], 1
    %1874 = vsyncpa %s1873, 1
    %1875 = vsyncpa [#allocation7], 1
    %1876 = vsyncpa [#allocation10], 1
    %1877 = vsyncpa [#allocation13], 1
    %1878 = vsyncpa [#allocation5], 1
    %s1879 = scalar_lea.sflag [#allocation5], 1
    %1880 = vsyncpa %s1879, 1

</llo_original>
